<compile_context>
chip_gen: v7x
topology: tpu7x:2x2x1
jax: 0.10.0
libtpu: 0.0.40
codegen_flags: <defaults>
</compile_context>

<pallas_src>
import jax
import jax.numpy as jnp
from jax.experimental import pallas as pl
from jax.experimental.pallas import tpu as pltpu


def _make_encoder_kernel(n_layers, S, B, H):
    """Fused multi-layer LSTM recurrence kernel for a fixed layer count / shape.

    Ref layout (positional):
      inputs : x2d (S*B, IN_pad) f32, w_ih0 (IN_pad, 4H) f32, b0 (1, 4H) f32,
               then per layer l:
                 l <  L-1: w_pack_l (H, 8H) bf16  = [W_hh_l^T | W_ih_{l+1}^T],
                           b_next_l (1, 4H) f32   = b_ih_{l+1} + b_hh_{l+1}
                 l == L-1: w_hh_l  (H, 4H) bf16
      outputs: h_end (B, H) f32
      scratch: gx_sc (S*B, 4H) f32   -- shared ping-pong input-gate buffer for all layers
    """
    G = 4 * H

    def kernel(*refs):
        x_ref = refs[0]          # (S*B, IN_pad) f32
        wih0_ref = refs[1]       # (IN_pad, 4H)  f32
        b0_ref = refs[2]         # (1, 4H)       f32
        idx = 3
        layers = []
        for l in range(n_layers):
            if l < n_layers - 1:
                layers.append((refs[idx], refs[idx + 1]))   # (w_pack, b_next)
                idx += 2
            else:
                layers.append((refs[idx], None))            # (w_hh_last, None)
                idx += 1
        h_end_ref = refs[idx]
        gx_sc = refs[idx + 1]    # (S*B, 4H) f32

        # ---- layer-0 input projection: ONE batched f32 matmul, off the serial chain ----
        gx_sc[...] = (
            jnp.dot(x_ref[...], wih0_ref[...], preferred_element_type=jnp.float32)
            + b0_ref[...]
        )

        # Gate-selection lane mask, hoisted out of all loops (JAX does not CSE iota/broadcast).
        lane = jax.lax.broadcasted_iota(jnp.int32, (B, G), 1)
        g_mask = (lane >= 2 * H) & (lane < 3 * H)

        # Full unroll for small fixed trip counts (LLO visibility); partial unroll otherwise.
        unroll = S if S <= 32 else 8

        def run_layer(w_ref, b_next_ref):
            """Serial LSTM recurrence. Only h_prev @ W sits on the per-step chain; when a
            next layer exists, that SAME matmul also produces its input projection."""
            fuse = b_next_ref is not None
            w = w_ref[...]                               # weight loaded once, stays in vregs
            b_next = b_next_ref[...] if fuse else None   # (1, 4H)

            def step(t, carry):
                h, c = carry
                # One MXU push: (B,H) x (H, 4H or 8H).
                full = jnp.dot(h.astype(w.dtype), w, preferred_element_type=jnp.float32)
                rec = full[:, :G] if fuse else full      # 128-lane aligned split (cheap)
                gates = gx_sc[pl.ds(t * B, B), :] + rec  # read BEFORE any write below
                # Full-vreg nonlinearities (2 wide EUP pushes), then slice activated values.
                # PyTorch gate order along 4H: i, f, g, o.
                act = jnp.where(g_mask, jnp.tanh(gates), jax.nn.sigmoid(gates))
                i_g = act[:, 0 * H:1 * H]
                f_g = act[:, 1 * H:2 * H]
                g_g = act[:, 2 * H:3 * H]
                o_g = act[:, 3 * H:4 * H]
                c_new = f_g * c + i_g * g_g
                h_new = o_g * jnp.tanh(c_new)
                if fuse:
                    # full[:, G:] = h_{t-1} @ W_ih_{l+1}  -> next layer's gx at time t-1.
                    # At t=0 this writes a junk value at row 0 which t=1 overwrites with the
                    # correct h_0 projection; the read of gx_sc[0:B] already happened above.
                    prev = jnp.maximum(t - 1, 0)
                    gx_sc[pl.ds(prev * B, B), :] = full[:, G:] + b_next
                return (h_new, c_new)

            init = (jnp.zeros((B, H), jnp.float32),      # PyTorch default zero (h0, c0)
                    jnp.zeros((B, H), jnp.float32))
            h_fin, _ = jax.lax.fori_loop(0, S, step, init, unroll=unroll)

            if fuse:
                # Tail: next layer's gx at the final timestep (projection of h_{S-1}).
                gx_sc[pl.ds((S - 1) * B, B), :] = (
                    jnp.dot(h_fin.astype(w.dtype), w[:, G:],
                            preferred_element_type=jnp.float32)
                    + b_next
                )
            return h_fin

        h_last = None
        for (w_ref, b_next_ref) in layers:
            h_last = run_layer(w_ref, b_next_ref)

        h_end_ref[...] = h_last.astype(h_end_ref.dtype)

    return kernel


@jax.jit
def encoder_forward(x, params):
    """Encoder.forward: stacked LSTM, returns last layer's final hidden state (B, H)."""
    S, B, IN = x.shape
    n_layers = len(params)
    H = params[0][1].shape[1]     # w_hh: (4H, H)
    G = 4 * H

    # Pad the layer-0 contraction dim to a sublane multiple (>= 8) for a clean f32 matmul.
    in_pad = max(8, ((IN + 7) // 8) * 8)
    x2d = x.reshape(S * B, IN).astype(jnp.float32)
    if in_pad != IN:
        x2d = jnp.pad(x2d, ((0, 0), (0, in_pad - IN)))

    w_ih0, w_hh0, b_ih0, b_hh0 = params[0]
    w_ih0_t = w_ih0.T.astype(jnp.float32)                      # (IN, 4H), kept f32
    if in_pad != IN:
        w_ih0_t = jnp.pad(w_ih0_t, ((0, in_pad - IN), (0, 0)))
    b0 = (b_ih0 + b_hh0).reshape(1, G).astype(jnp.float32)

    inputs = [x2d, w_ih0_t, b0]
    for l in range(n_layers):
        w_hh_t = params[l][1].T.astype(jnp.bfloat16)           # (H, 4H)
        if l < n_layers - 1:
            w_ih_next_t = params[l + 1][0].T.astype(jnp.bfloat16)   # (H, 4H)
            inputs.append(jnp.concatenate([w_hh_t, w_ih_next_t], axis=1))   # (H, 8H)
            b_next = (params[l + 1][2] + params[l + 1][3]).reshape(1, G).astype(jnp.float32)
            inputs.append(b_next)
        else:
            inputs.append(w_hh_t)

    # Explicit VMEM budget (generous margin), capped at 64 MiB so it's valid on v7x too.
    needed = S * B * G * 4            # gx scratch (f32)
    needed += S * B * in_pad * 4      # x
    needed += in_pad * G * 4 + G * 4  # layer-0 weight + bias
    needed += n_layers * (H * 2 * G * 2 + G * 4)   # packed weights (bf16) + biases
    needed += B * H * 4               # output
    vmem_limit = min(64 * 1024 * 1024, 2 * needed + (16 << 20))

    kernel = _make_encoder_kernel(n_layers, S, B, H)

    h_end = pl.pallas_call(
        kernel,
        out_shape=jax.ShapeDtypeStruct((B, H), jnp.float32),
        in_specs=[pl.BlockSpec(memory_space=pltpu.MemorySpace.VMEM)] * len(inputs),
        out_specs=pl.BlockSpec(memory_space=pltpu.MemorySpace.VMEM),
        scratch_shapes=[pltpu.VMEM((S * B, G), jnp.float32)],
        compiler_params=pltpu.CompilerParams(vmem_limit_bytes=int(vmem_limit)),
    )(*inputs)
    return h_end


def init_encoder_params(key, number_of_features, hidden_size, hidden_layer_depth):
    """Deterministic init matching nn.LSTM parameter shapes (uniform(-k, k), k=1/sqrt(H))."""
    k = 1.0 / jnp.sqrt(jnp.float32(hidden_size))
    params = []
    for layer in range(hidden_layer_depth):
        in_dim = number_of_features if layer == 0 else hidden_size
        key, k1, k2, k3, k4 = jax.random.split(key, 5)
        w_ih = jax.random.uniform(k1, (4 * hidden_size, in_dim), jnp.float32, -k, k)
        w_hh = jax.random.uniform(k2, (4 * hidden_size, hidden_size), jnp.float32, -k, k)
        b_ih = jax.random.uniform(k3, (4 * hidden_size,), jnp.float32, -k, k)
        b_hh = jax.random.uniform(k4, (4 * hidden_size,), jnp.float32, -k, k)
        params.append((w_ih, w_hh, b_ih, b_hh))
    return params


def _reference_encoder(x, params):
    """Pure-JAX f32 reference (lax.scan LSTM) for correctness checking."""

    def layer_ref(seq, w_ih, w_hh, b_ih, b_hh):
        H = w_hh.shape[1]
        B = seq.shape[1]

        def step(carry, x_t):
            h, c = carry
            gates = x_t @ w_ih.T + h @ w_hh.T + b_ih + b_hh
            i = jax.nn.sigmoid(gates[:, 0 * H:1 * H])
            f = jax.nn.sigmoid(gates[:, 1 * H:2 * H])
            g = jnp.tanh(gates[:, 2 * H:3 * H])
            o = jax.nn.sigmoid(gates[:, 3 * H:4 * H])
            c_new = f * c + i * g
            h_new = o * jnp.tanh(c_new)
            return (h_new, c_new), h_new

        init = (jnp.zeros((B, H), jnp.float32), jnp.zeros((B, H), jnp.float32))
        _, ys = jax.lax.scan(step, init, seq)
        return ys

    h_seq = x
    for (w_ih, w_hh, b_ih, b_hh) in params:
        h_seq = layer_ref(h_seq, w_ih, w_hh, b_ih, b_hh)
    return h_seq[-1]


if __name__ == "__main__":
    # Shapes consistent with Encoder.forward:
    #   x: (sequence_length, batch_size, number_of_features)
    seq_len = 8
    batch = 2
    number_of_features = 4
    hidden_size = 32
    hidden_layer_depth = 2
    # latent_length / dropout are unused by forward (dropout inactive at inference).

    key = jax.random.PRNGKey(0)
    key, xkey = jax.random.split(key)
    x = jax.random.normal(xkey, (seq_len, batch, number_of_features), jnp.float32)

    params = init_encoder_params(key, number_of_features, hidden_size, hidden_layer_depth)

    h_end = encoder_forward(x, params)
    h_end = jax.block_until_ready(h_end)
    assert h_end.shape == (batch, hidden_size), h_end.shape

    # Sanity check against pure-JAX f32 reference (recurrent weights are bf16 with f32
    # accumulation inside the kernel, so allow a loose-but-tight-enough tolerance).
    h_ref = jax.block_until_ready(_reference_encoder(x, params))
    max_err = float(jnp.max(jnp.abs(h_end - h_ref)))
    assert jnp.allclose(h_end, h_ref, atol=2e-2, rtol=2e-2), max_err

    print("KERNEL_OK")
</pallas_src>

<mosaic_0001>
module attributes {stable_mosaic.version = 11 : i64} {
  func.func @kernel(%arg0: memref<16x8xf32, #tpu.memory_space<vmem>>, %arg1: memref<8x128xf32, #tpu.memory_space<vmem>>, %arg2: memref<1x128xf32, #tpu.memory_space<vmem>>, %arg3: memref<32x256xbf16, #tpu.memory_space<vmem>>, %arg4: memref<1x128xf32, #tpu.memory_space<vmem>>, %arg5: memref<32x128xbf16, #tpu.memory_space<vmem>>, %arg6: memref<2x32xf32, #tpu.memory_space<vmem>>, %arg7: memref<16x128xf32, #tpu.memory_space<vmem>>) attributes {dimension_semantics = [], scalar_prefetch = 0 : i64, scratch_operands = 1 : i64, tpu.core_type = #tpu.core_type<tc>} {
    %c0 = arith.constant 0 : index
    %c0_0 = arith.constant 0 : index
    %0 = vector.load %arg0[%c0, %c0_0] : memref<16x8xf32, #tpu.memory_space<vmem>>, vector<16x8xf32>
    %c0_1 = arith.constant 0 : index
    %c0_2 = arith.constant 0 : index
    %1 = vector.load %arg1[%c0_1, %c0_2] : memref<8x128xf32, #tpu.memory_space<vmem>>, vector<8x128xf32>
    %cst = arith.constant dense<0.000000e+00> : vector<16x128xf32>
    %2 = tpu.matmul %0, %1, %cst {dimension_numbers = #tpu.dot_dimension_numbers<[1], [0], [0], [1], [0, 0, 1, 1], [], []>} : vector<16x8xf32>, vector<8x128xf32>, vector<16x128xf32> -> vector<16x128xf32>
    %c0_3 = arith.constant 0 : index
    %c0_4 = arith.constant 0 : index
    %3 = vector.load %arg2[%c0_3, %c0_4] : memref<1x128xf32, #tpu.memory_space<vmem>>, vector<1x128xf32>
    %4 = vector.broadcast %3 : vector<1x128xf32> to vector<16x128xf32>
    %5 = arith.addf %2, %4 : vector<16x128xf32>
    %c0_5 = arith.constant 0 : index
    %c0_6 = arith.constant 0 : index
    %6 = vector.load %arg7[%c0_5, %c0_6] : memref<16x128xf32, #tpu.memory_space<vmem>>, vector<16x128xf32>
    tpu.vector_store %arg7[%c0_5, %c0_6], %5 {strides = array<i32>} : memref<16x128xf32, #tpu.memory_space<vmem>>, vector<16x128xf32>,
    %7 = tpu.iota {dimensions = array<i32: 1>} : vector<2x128xi32>
    %c64_i32 = arith.constant 64 : i32
    %8 = vector.broadcast %c64_i32 : i32 to vector<2x128xi32>
    %9 = arith.cmpi sge, %7, %8 : vector<2x128xi32>
    %c96_i32 = arith.constant 96 : i32
    %10 = vector.broadcast %c96_i32 : i32 to vector<2x128xi32>
    %11 = arith.cmpi slt, %7, %10 : vector<2x128xi32>
    %12 = arith.andi %9, %11 : vector<2x128xi1>
    %c0_7 = arith.constant 0 : index
    %c0_8 = arith.constant 0 : index
    %13 = vector.load %arg3[%c0_7, %c0_8] : memref<32x256xbf16, #tpu.memory_space<vmem>>, vector<32x256xbf16>
    %c0_9 = arith.constant 0 : index
    %c0_10 = arith.constant 0 : index
    %14 = vector.load %arg4[%c0_9, %c0_10] : memref<1x128xf32, #tpu.memory_space<vmem>>, vector<1x128xf32>
    %cst_11 = arith.constant 0.000000e+00 : f32
    %15 = vector.broadcast %cst_11 : f32 to vector<2x32xf32>
    %cst_12 = arith.constant 0.000000e+00 : f32
    %16 = vector.broadcast %cst_12 : f32 to vector<2x32xf32>
    %c0_i32 = arith.constant 0 : i32
    %17 = arith.truncf %15 : vector<2x32xf32> to vector<2x32xbf16>
    %cst_13 = arith.constant dense<0.000000e+00> : vector<2x256xf32>
    %18 = tpu.matmul %17, %13, %cst_13 {dimension_numbers = #tpu.dot_dimension_numbers<[1], [0], [0], [1], [0, 0, 1, 1], [], []>} : vector<2x32xbf16>, vector<32x256xbf16>, vector<2x256xf32> -> vector<2x256xf32>
    %19 = vector.extract_strided_slice %18 {offsets = [0, 0], sizes = [2, 128], strides = [1, 1]} : vector<2x256xf32> to vector<2x128xf32>
    %c2_i32 = arith.constant 2 : i32
    %20 = arith.muli %c0_i32, %c2_i32 : i32
    %21 = arith.index_cast %20 : i32 to index
    %c0_14 = arith.constant 0 : index
    %22 = vector.load %arg7[%21, %c0_14] : memref<16x128xf32, #tpu.memory_space<vmem>>, vector<2x128xf32>
    %23 = arith.addf %22, %19 : vector<2x128xf32>
    %24 = math.tanh %23 : vector<2x128xf32>
    %25 = arith.negf %23 : vector<2x128xf32>
    %26 = math.exp %25 : vector<2x128xf32>
    %cst_15 = arith.constant 1.000000e+00 : f32
    %27 = vector.broadcast %cst_15 : f32 to vector<2x128xf32>
    %28 = arith.addf %27, %26 : vector<2x128xf32>
    %29 = arith.divf %27, %28 : vector<2x128xf32>
    %30 = arith.select %12, %24, %29 : vector<2x128xi1>, vector<2x128xf32>
    %31 = vector.extract_strided_slice %30 {offsets = [0, 0], sizes = [2, 32], strides = [1, 1]} : vector<2x128xf32> to vector<2x32xf32>
    %32 = vector.extract_strided_slice %30 {offsets = [0, 32], sizes = [2, 32], strides = [1, 1]} : vector<2x128xf32> to vector<2x32xf32>
    %33 = vector.extract_strided_slice %30 {offsets = [0, 64], sizes = [2, 32], strides = [1, 1]} : vector<2x128xf32> to vector<2x32xf32>
    %34 = vector.extract_strided_slice %30 {offsets = [0, 96], sizes = [2, 32], strides = [1, 1]} : vector<2x128xf32> to vector<2x32xf32>
    %35 = arith.mulf %32, %16 : vector<2x32xf32>
    %36 = arith.mulf %31, %33 : vector<2x32xf32>
    %37 = arith.addf %35, %36 : vector<2x32xf32>
    %38 = math.tanh %37 : vector<2x32xf32>
    %39 = arith.mulf %34, %38 : vector<2x32xf32>
    %c1_i32 = arith.constant 1 : i32
    %40 = arith.subi %c0_i32, %c1_i32 : i32
    %c0_i32_16 = arith.constant 0 : i32
    %41 = arith.maxsi %40, %c0_i32_16 : i32
    %42 = vector.extract_strided_slice %18 {offsets = [0, 128], sizes = [2, 128], strides = [1, 1]} : vector<2x256xf32> to vector<2x128xf32>
    %43 = vector.broadcast %14 : vector<1x128xf32> to vector<2x128xf32>
    %44 = arith.addf %42, %43 : vector<2x128xf32>
    %c2_i32_17 = arith.constant 2 : i32
    %45 = arith.muli %41, %c2_i32_17 : i32
    %46 = arith.index_cast %45 : i32 to index
    %c0_18 = arith.constant 0 : index
    %47 = vector.load %arg7[%46, %c0_18] : memref<16x128xf32, #tpu.memory_space<vmem>>, vector<2x128xf32>
    tpu.vector_store %arg7[%46, %c0_18], %44 {strides = array<i32>} : memref<16x128xf32, #tpu.memory_space<vmem>>, vector<2x128xf32>,
    %c1_i32_19 = arith.constant 1 : i32
    %48 = arith.truncf %39 : vector<2x32xf32> to vector<2x32xbf16>
    %cst_20 = arith.constant dense<0.000000e+00> : vector<2x256xf32>
    %49 = tpu.matmul %48, %13, %cst_20 {dimension_numbers = #tpu.dot_dimension_numbers<[1], [0], [0], [1], [0, 0, 1, 1], [], []>} : vector<2x32xbf16>, vector<32x256xbf16>, vector<2x256xf32> -> vector<2x256xf32>
    %50 = vector.extract_strided_slice %49 {offsets = [0, 0], sizes = [2, 128], strides = [1, 1]} : vector<2x256xf32> to vector<2x128xf32>
    %c2_i32_21 = arith.constant 2 : i32
    %51 = arith.muli %c1_i32_19, %c2_i32_21 : i32
    %52 = arith.index_cast %51 : i32 to index
    %c0_22 = arith.constant 0 : index
    %53 = vector.load %arg7[%52, %c0_22] : memref<16x128xf32, #tpu.memory_space<vmem>>, vector<2x128xf32>
    %54 = arith.addf %53, %50 : vector<2x128xf32>
    %55 = math.tanh %54 : vector<2x128xf32>
    %56 = arith.negf %54 : vector<2x128xf32>
    %57 = math.exp %56 : vector<2x128xf32>
    %cst_23 = arith.constant 1.000000e+00 : f32
    %58 = vector.broadcast %cst_23 : f32 to vector<2x128xf32>
    %59 = arith.addf %58, %57 : vector<2x128xf32>
    %60 = arith.divf %58, %59 : vector<2x128xf32>
    %61 = arith.select %12, %55, %60 : vector<2x128xi1>, vector<2x128xf32>
    %62 = vector.extract_strided_slice %61 {offsets = [0, 0], sizes = [2, 32], strides = [1, 1]} : vector<2x128xf32> to vector<2x32xf32>
    %63 = vector.extract_strided_slice %61 {offsets = [0, 32], sizes = [2, 32], strides = [1, 1]} : vector<2x128xf32> to vector<2x32xf32>
    %64 = vector.extract_strided_slice %61 {offsets = [0, 64], sizes = [2, 32], strides = [1, 1]} : vector<2x128xf32> to vector<2x32xf32>
    %65 = vector.extract_strided_slice %61 {offsets = [0, 96], sizes = [2, 32], strides = [1, 1]} : vector<2x128xf32> to vector<2x32xf32>
    %66 = arith.mulf %63, %37 : vector<2x32xf32>
    %67 = arith.mulf %62, %64 : vector<2x32xf32>
    %68 = arith.addf %66, %67 : vector<2x32xf32>
    %69 = math.tanh %68 : vector<2x32xf32>
    %70 = arith.mulf %65, %69 : vector<2x32xf32>
    %c1_i32_24 = arith.constant 1 : i32
    %71 = arith.subi %c1_i32_19, %c1_i32_24 : i32
    %c0_i32_25 = arith.constant 0 : i32
    %72 = arith.maxsi %71, %c0_i32_25 : i32
    %73 = vector.extract_strided_slice %49 {offsets = [0, 128], sizes = [2, 128], strides = [1, 1]} : vector<2x256xf32> to vector<2x128xf32>
    %74 = vector.broadcast %14 : vector<1x128xf32> to vector<2x128xf32>
    %75 = arith.addf %73, %74 : vector<2x128xf32>
    %c2_i32_26 = arith.constant 2 : i32
    %76 = arith.muli %72, %c2_i32_26 : i32
    %77 = arith.index_cast %76 : i32 to index
    %c0_27 = arith.constant 0 : index
    %78 = vector.load %arg7[%77, %c0_27] : memref<16x128xf32, #tpu.memory_space<vmem>>, vector<2x128xf32>
    tpu.vector_store %arg7[%77, %c0_27], %75 {strides = array<i32>} : memref<16x128xf32, #tpu.memory_space<vmem>>, vector<2x128xf32>,
    %c2_i32_28 = arith.constant 2 : i32
    %79 = arith.truncf %70 : vector<2x32xf32> to vector<2x32xbf16>
    %cst_29 = arith.constant dense<0.000000e+00> : vector<2x256xf32>
    %80 = tpu.matmul %79, %13, %cst_29 {dimension_numbers = #tpu.dot_dimension_numbers<[1], [0], [0], [1], [0, 0, 1, 1], [], []>} : vector<2x32xbf16>, vector<32x256xbf16>, vector<2x256xf32> -> vector<2x256xf32>
    %81 = vector.extract_strided_slice %80 {offsets = [0, 0], sizes = [2, 128], strides = [1, 1]} : vector<2x256xf32> to vector<2x128xf32>
    %c2_i32_30 = arith.constant 2 : i32
    %82 = arith.muli %c2_i32_28, %c2_i32_30 : i32
    %83 = arith.index_cast %82 : i32 to index
    %c0_31 = arith.constant 0 : index
    %84 = vector.load %arg7[%83, %c0_31] : memref<16x128xf32, #tpu.memory_space<vmem>>, vector<2x128xf32>
    %85 = arith.addf %84, %81 : vector<2x128xf32>
    %86 = math.tanh %85 : vector<2x128xf32>
    %87 = arith.negf %85 : vector<2x128xf32>
    %88 = math.exp %87 : vector<2x128xf32>
    %cst_32 = arith.constant 1.000000e+00 : f32
    %89 = vector.broadcast %cst_32 : f32 to vector<2x128xf32>
    %90 = arith.addf %89, %88 : vector<2x128xf32>
    %91 = arith.divf %89, %90 : vector<2x128xf32>
    %92 = arith.select %12, %86, %91 : vector<2x128xi1>, vector<2x128xf32>
    %93 = vector.extract_strided_slice %92 {offsets = [0, 0], sizes = [2, 32], strides = [1, 1]} : vector<2x128xf32> to vector<2x32xf32>
    %94 = vector.extract_strided_slice %92 {offsets = [0, 32], sizes = [2, 32], strides = [1, 1]} : vector<2x128xf32> to vector<2x32xf32>
    %95 = vector.extract_strided_slice %92 {offsets = [0, 64], sizes = [2, 32], strides = [1, 1]} : vector<2x128xf32> to vector<2x32xf32>
    %96 = vector.extract_strided_slice %92 {offsets = [0, 96], sizes = [2, 32], strides = [1, 1]} : vector<2x128xf32> to vector<2x32xf32>
    %97 = arith.mulf %94, %68 : vector<2x32xf32>
    %98 = arith.mulf %93, %95 : vector<2x32xf32>
    %99 = arith.addf %97, %98 : vector<2x32xf32>
    %100 = math.tanh %99 : vector<2x32xf32>
    %101 = arith.mulf %96, %100 : vector<2x32xf32>
    %c1_i32_33 = arith.constant 1 : i32
    %102 = arith.subi %c2_i32_28, %c1_i32_33 : i32
    %c0_i32_34 = arith.constant 0 : i32
    %103 = arith.maxsi %102, %c0_i32_34 : i32
    %104 = vector.extract_strided_slice %80 {offsets = [0, 128], sizes = [2, 128], strides = [1, 1]} : vector<2x256xf32> to vector<2x128xf32>
    %105 = vector.broadcast %14 : vector<1x128xf32> to vector<2x128xf32>
    %106 = arith.addf %104, %105 : vector<2x128xf32>
    %c2_i32_35 = arith.constant 2 : i32
    %107 = arith.muli %103, %c2_i32_35 : i32
    %108 = arith.index_cast %107 : i32 to index
    %c0_36 = arith.constant 0 : index
    %109 = vector.load %arg7[%108, %c0_36] : memref<16x128xf32, #tpu.memory_space<vmem>>, vector<2x128xf32>
    tpu.vector_store %arg7[%108, %c0_36], %106 {strides = array<i32>} : memref<16x128xf32, #tpu.memory_space<vmem>>, vector<2x128xf32>,
    %c3_i32 = arith.constant 3 : i32
    %110 = arith.truncf %101 : vector<2x32xf32> to vector<2x32xbf16>
    %cst_37 = arith.constant dense<0.000000e+00> : vector<2x256xf32>
    %111 = tpu.matmul %110, %13, %cst_37 {dimension_numbers = #tpu.dot_dimension_numbers<[1], [0], [0], [1], [0, 0, 1, 1], [], []>} : vector<2x32xbf16>, vector<32x256xbf16>, vector<2x256xf32> -> vector<2x256xf32>
    %112 = vector.extract_strided_slice %111 {offsets = [0, 0], sizes = [2, 128], strides = [1, 1]} : vector<2x256xf32> to vector<2x128xf32>
    %c2_i32_38 = arith.constant 2 : i32
    %113 = arith.muli %c3_i32, %c2_i32_38 : i32
    %114 = arith.index_cast %113 : i32 to index
    %c0_39 = arith.constant 0 : index
    %115 = vector.load %arg7[%114, %c0_39] : memref<16x128xf32, #tpu.memory_space<vmem>>, vector<2x128xf32>
    %116 = arith.addf %115, %112 : vector<2x128xf32>
    %117 = math.tanh %116 : vector<2x128xf32>
    %118 = arith.negf %116 : vector<2x128xf32>
    %119 = math.exp %118 : vector<2x128xf32>
    %cst_40 = arith.constant 1.000000e+00 : f32
    %120 = vector.broadcast %cst_40 : f32 to vector<2x128xf32>
    %121 = arith.addf %120, %119 : vector<2x128xf32>
    %122 = arith.divf %120, %121 : vector<2x128xf32>
    %123 = arith.select %12, %117, %122 : vector<2x128xi1>, vector<2x128xf32>
    %124 = vector.extract_strided_slice %123 {offsets = [0, 0], sizes = [2, 32], strides = [1, 1]} : vector<2x128xf32> to vector<2x32xf32>
    %125 = vector.extract_strided_slice %123 {offsets = [0, 32], sizes = [2, 32], strides = [1, 1]} : vector<2x128xf32> to vector<2x32xf32>
    %126 = vector.extract_strided_slice %123 {offsets = [0, 64], sizes = [2, 32], strides = [1, 1]} : vector<2x128xf32> to vector<2x32xf32>
    %127 = vector.extract_strided_slice %123 {offsets = [0, 96], sizes = [2, 32], strides = [1, 1]} : vector<2x128xf32> to vector<2x32xf32>
    %128 = arith.mulf %125, %99 : vector<2x32xf32>
    %129 = arith.mulf %124, %126 : vector<2x32xf32>
    %130 = arith.addf %128, %129 : vector<2x32xf32>
    %131 = math.tanh %130 : vector<2x32xf32>
    %132 = arith.mulf %127, %131 : vector<2x32xf32>
    %c1_i32_41 = arith.constant 1 : i32
    %133 = arith.subi %c3_i32, %c1_i32_41 : i32
    %c0_i32_42 = arith.constant 0 : i32
    %134 = arith.maxsi %133, %c0_i32_42 : i32
    %135 = vector.extract_strided_slice %111 {offsets = [0, 128], sizes = [2, 128], strides = [1, 1]} : vector<2x256xf32> to vector<2x128xf32>
    %136 = vector.broadcast %14 : vector<1x128xf32> to vector<2x128xf32>
    %137 = arith.addf %135, %136 : vector<2x128xf32>
    %c2_i32_43 = arith.constant 2 : i32
    %138 = arith.muli %134, %c2_i32_43 : i32
    %139 = arith.index_cast %138 : i32 to index
    %c0_44 = arith.constant 0 : index
    %140 = vector.load %arg7[%139, %c0_44] : memref<16x128xf32, #tpu.memory_space<vmem>>, vector<2x128xf32>
    tpu.vector_store %arg7[%139, %c0_44], %137 {strides = array<i32>} : memref<16x128xf32, #tpu.memory_space<vmem>>, vector<2x128xf32>,
    %c4_i32 = arith.constant 4 : i32
    %141 = arith.truncf %132 : vector<2x32xf32> to vector<2x32xbf16>
    %cst_45 = arith.constant dense<0.000000e+00> : vector<2x256xf32>
    %142 = tpu.matmul %141, %13, %cst_45 {dimension_numbers = #tpu.dot_dimension_numbers<[1], [0], [0], [1], [0, 0, 1, 1], [], []>} : vector<2x32xbf16>, vector<32x256xbf16>, vector<2x256xf32> -> vector<2x256xf32>
    %143 = vector.extract_strided_slice %142 {offsets = [0, 0], sizes = [2, 128], strides = [1, 1]} : vector<2x256xf32> to vector<2x128xf32>
    %c2_i32_46 = arith.constant 2 : i32
    %144 = arith.muli %c4_i32, %c2_i32_46 : i32
    %145 = arith.index_cast %144 : i32 to index
    %c0_47 = arith.constant 0 : index
    %146 = vector.load %arg7[%145, %c0_47] : memref<16x128xf32, #tpu.memory_space<vmem>>, vector<2x128xf32>
    %147 = arith.addf %146, %143 : vector<2x128xf32>
    %148 = math.tanh %147 : vector<2x128xf32>
    %149 = arith.negf %147 : vector<2x128xf32>
    %150 = math.exp %149 : vector<2x128xf32>
    %cst_48 = arith.constant 1.000000e+00 : f32
    %151 = vector.broadcast %cst_48 : f32 to vector<2x128xf32>
    %152 = arith.addf %151, %150 : vector<2x128xf32>
    %153 = arith.divf %151, %152 : vector<2x128xf32>
    %154 = arith.select %12, %148, %153 : vector<2x128xi1>, vector<2x128xf32>
    %155 = vector.extract_strided_slice %154 {offsets = [0, 0], sizes = [2, 32], strides = [1, 1]} : vector<2x128xf32> to vector<2x32xf32>
    %156 = vector.extract_strided_slice %154 {offsets = [0, 32], sizes = [2, 32], strides = [1, 1]} : vector<2x128xf32> to vector<2x32xf32>
    %157 = vector.extract_strided_slice %154 {offsets = [0, 64], sizes = [2, 32], strides = [1, 1]} : vector<2x128xf32> to vector<2x32xf32>
    %158 = vector.extract_strided_slice %154 {offsets = [0, 96], sizes = [2, 32], strides = [1, 1]} : vector<2x128xf32> to vector<2x32xf32>
    %159 = arith.mulf %156, %130 : vector<2x32xf32>
    %160 = arith.mulf %155, %157 : vector<2x32xf32>
    %161 = arith.addf %159, %160 : vector<2x32xf32>
    %162 = math.tanh %161 : vector<2x32xf32>
    %163 = arith.mulf %158, %162 : vector<2x32xf32>
    %c1_i32_49 = arith.constant 1 : i32
    %164 = arith.subi %c4_i32, %c1_i32_49 : i32
    %c0_i32_50 = arith.constant 0 : i32
    %165 = arith.maxsi %164, %c0_i32_50 : i32
    %166 = vector.extract_strided_slice %142 {offsets = [0, 128], sizes = [2, 128], strides = [1, 1]} : vector<2x256xf32> to vector<2x128xf32>
    %167 = vector.broadcast %14 : vector<1x128xf32> to vector<2x128xf32>
    %168 = arith.addf %166, %167 : vector<2x128xf32>
    %c2_i32_51 = arith.constant 2 : i32
    %169 = arith.muli %165, %c2_i32_51 : i32
    %170 = arith.index_cast %169 : i32 to index
    %c0_52 = arith.constant 0 : index
    %171 = vector.load %arg7[%170, %c0_52] : memref<16x128xf32, #tpu.memory_space<vmem>>, vector<2x128xf32>
    tpu.vector_store %arg7[%170, %c0_52], %168 {strides = array<i32>} : memref<16x128xf32, #tpu.memory_space<vmem>>, vector<2x128xf32>,
    %c5_i32 = arith.constant 5 : i32
    %172 = arith.truncf %163 : vector<2x32xf32> to vector<2x32xbf16>
    %cst_53 = arith.constant dense<0.000000e+00> : vector<2x256xf32>
    %173 = tpu.matmul %172, %13, %cst_53 {dimension_numbers = #tpu.dot_dimension_numbers<[1], [0], [0], [1], [0, 0, 1, 1], [], []>} : vector<2x32xbf16>, vector<32x256xbf16>, vector<2x256xf32> -> vector<2x256xf32>
    %174 = vector.extract_strided_slice %173 {offsets = [0, 0], sizes = [2, 128], strides = [1, 1]} : vector<2x256xf32> to vector<2x128xf32>
    %c2_i32_54 = arith.constant 2 : i32
    %175 = arith.muli %c5_i32, %c2_i32_54 : i32
    %176 = arith.index_cast %175 : i32 to index
    %c0_55 = arith.constant 0 : index
    %177 = vector.load %arg7[%176, %c0_55] : memref<16x128xf32, #tpu.memory_space<vmem>>, vector<2x128xf32>
    %178 = arith.addf %177, %174 : vector<2x128xf32>
    %179 = math.tanh %178 : vector<2x128xf32>
    %180 = arith.negf %178 : vector<2x128xf32>
    %181 = math.exp %180 : vector<2x128xf32>
    %cst_56 = arith.constant 1.000000e+00 : f32
    %182 = vector.broadcast %cst_56 : f32 to vector<2x128xf32>
    %183 = arith.addf %182, %181 : vector<2x128xf32>
    %184 = arith.divf %182, %183 : vector<2x128xf32>
    %185 = arith.select %12, %179, %184 : vector<2x128xi1>, vector<2x128xf32>
    %186 = vector.extract_strided_slice %185 {offsets = [0, 0], sizes = [2, 32], strides = [1, 1]} : vector<2x128xf32> to vector<2x32xf32>
    %187 = vector.extract_strided_slice %185 {offsets = [0, 32], sizes = [2, 32], strides = [1, 1]} : vector<2x128xf32> to vector<2x32xf32>
    %188 = vector.extract_strided_slice %185 {offsets = [0, 64], sizes = [2, 32], strides = [1, 1]} : vector<2x128xf32> to vector<2x32xf32>
    %189 = vector.extract_strided_slice %185 {offsets = [0, 96], sizes = [2, 32], strides = [1, 1]} : vector<2x128xf32> to vector<2x32xf32>
    %190 = arith.mulf %187, %161 : vector<2x32xf32>
    %191 = arith.mulf %186, %188 : vector<2x32xf32>
    %192 = arith.addf %190, %191 : vector<2x32xf32>
    %193 = math.tanh %192 : vector<2x32xf32>
    %194 = arith.mulf %189, %193 : vector<2x32xf32>
    %c1_i32_57 = arith.constant 1 : i32
    %195 = arith.subi %c5_i32, %c1_i32_57 : i32
    %c0_i32_58 = arith.constant 0 : i32
    %196 = arith.maxsi %195, %c0_i32_58 : i32
    %197 = vector.extract_strided_slice %173 {offsets = [0, 128], sizes = [2, 128], strides = [1, 1]} : vector<2x256xf32> to vector<2x128xf32>
    %198 = vector.broadcast %14 : vector<1x128xf32> to vector<2x128xf32>
    %199 = arith.addf %197, %198 : vector<2x128xf32>
    %c2_i32_59 = arith.constant 2 : i32
    %200 = arith.muli %196, %c2_i32_59 : i32
    %201 = arith.index_cast %200 : i32 to index
    %c0_60 = arith.constant 0 : index
    %202 = vector.load %arg7[%201, %c0_60] : memref<16x128xf32, #tpu.memory_space<vmem>>, vector<2x128xf32>
    tpu.vector_store %arg7[%201, %c0_60], %199 {strides = array<i32>} : memref<16x128xf32, #tpu.memory_space<vmem>>, vector<2x128xf32>,
    %c6_i32 = arith.constant 6 : i32
    %203 = arith.truncf %194 : vector<2x32xf32> to vector<2x32xbf16>
    %cst_61 = arith.constant dense<0.000000e+00> : vector<2x256xf32>
    %204 = tpu.matmul %203, %13, %cst_61 {dimension_numbers = #tpu.dot_dimension_numbers<[1], [0], [0], [1], [0, 0, 1, 1], [], []>} : vector<2x32xbf16>, vector<32x256xbf16>, vector<2x256xf32> -> vector<2x256xf32>
    %205 = vector.extract_strided_slice %204 {offsets = [0, 0], sizes = [2, 128], strides = [1, 1]} : vector<2x256xf32> to vector<2x128xf32>
    %c2_i32_62 = arith.constant 2 : i32
    %206 = arith.muli %c6_i32, %c2_i32_62 : i32
    %207 = arith.index_cast %206 : i32 to index
    %c0_63 = arith.constant 0 : index
    %208 = vector.load %arg7[%207, %c0_63] : memref<16x128xf32, #tpu.memory_space<vmem>>, vector<2x128xf32>
    %209 = arith.addf %208, %205 : vector<2x128xf32>
    %210 = math.tanh %209 : vector<2x128xf32>
    %211 = arith.negf %209 : vector<2x128xf32>
    %212 = math.exp %211 : vector<2x128xf32>
    %cst_64 = arith.constant 1.000000e+00 : f32
    %213 = vector.broadcast %cst_64 : f32 to vector<2x128xf32>
    %214 = arith.addf %213, %212 : vector<2x128xf32>
    %215 = arith.divf %213, %214 : vector<2x128xf32>
    %216 = arith.select %12, %210, %215 : vector<2x128xi1>, vector<2x128xf32>
    %217 = vector.extract_strided_slice %216 {offsets = [0, 0], sizes = [2, 32], strides = [1, 1]} : vector<2x128xf32> to vector<2x32xf32>
    %218 = vector.extract_strided_slice %216 {offsets = [0, 32], sizes = [2, 32], strides = [1, 1]} : vector<2x128xf32> to vector<2x32xf32>
    %219 = vector.extract_strided_slice %216 {offsets = [0, 64], sizes = [2, 32], strides = [1, 1]} : vector<2x128xf32> to vector<2x32xf32>
    %220 = vector.extract_strided_slice %216 {offsets = [0, 96], sizes = [2, 32], strides = [1, 1]} : vector<2x128xf32> to vector<2x32xf32>
    %221 = arith.mulf %218, %192 : vector<2x32xf32>
    %222 = arith.mulf %217, %219 : vector<2x32xf32>
    %223 = arith.addf %221, %222 : vector<2x32xf32>
    %224 = math.tanh %223 : vector<2x32xf32>
    %225 = arith.mulf %220, %224 : vector<2x32xf32>
    %c1_i32_65 = arith.constant 1 : i32
    %226 = arith.subi %c6_i32, %c1_i32_65 : i32
    %c0_i32_66 = arith.constant 0 : i32
    %227 = arith.maxsi %226, %c0_i32_66 : i32
    %228 = vector.extract_strided_slice %204 {offsets = [0, 128], sizes = [2, 128], strides = [1, 1]} : vector<2x256xf32> to vector<2x128xf32>
    %229 = vector.broadcast %14 : vector<1x128xf32> to vector<2x128xf32>
    %230 = arith.addf %228, %229 : vector<2x128xf32>
    %c2_i32_67 = arith.constant 2 : i32
    %231 = arith.muli %227, %c2_i32_67 : i32
    %232 = arith.index_cast %231 : i32 to index
    %c0_68 = arith.constant 0 : index
    %233 = vector.load %arg7[%232, %c0_68] : memref<16x128xf32, #tpu.memory_space<vmem>>, vector<2x128xf32>
    tpu.vector_store %arg7[%232, %c0_68], %230 {strides = array<i32>} : memref<16x128xf32, #tpu.memory_space<vmem>>, vector<2x128xf32>,
    %c7_i32 = arith.constant 7 : i32
    %234 = arith.truncf %225 : vector<2x32xf32> to vector<2x32xbf16>
    %cst_69 = arith.constant dense<0.000000e+00> : vector<2x256xf32>
    %235 = tpu.matmul %234, %13, %cst_69 {dimension_numbers = #tpu.dot_dimension_numbers<[1], [0], [0], [1], [0, 0, 1, 1], [], []>} : vector<2x32xbf16>, vector<32x256xbf16>, vector<2x256xf32> -> vector<2x256xf32>
    %236 = vector.extract_strided_slice %235 {offsets = [0, 0], sizes = [2, 128], strides = [1, 1]} : vector<2x256xf32> to vector<2x128xf32>
    %c2_i32_70 = arith.constant 2 : i32
    %237 = arith.muli %c7_i32, %c2_i32_70 : i32
    %238 = arith.index_cast %237 : i32 to index
    %c0_71 = arith.constant 0 : index
    %239 = vector.load %arg7[%238, %c0_71] : memref<16x128xf32, #tpu.memory_space<vmem>>, vector<2x128xf32>
    %240 = arith.addf %239, %236 : vector<2x128xf32>
    %241 = math.tanh %240 : vector<2x128xf32>
    %242 = arith.negf %240 : vector<2x128xf32>
    %243 = math.exp %242 : vector<2x128xf32>
    %cst_72 = arith.constant 1.000000e+00 : f32
    %244 = vector.broadcast %cst_72 : f32 to vector<2x128xf32>
    %245 = arith.addf %244, %243 : vector<2x128xf32>
    %246 = arith.divf %244, %245 : vector<2x128xf32>
    %247 = arith.select %12, %241, %246 : vector<2x128xi1>, vector<2x128xf32>
    %248 = vector.extract_strided_slice %247 {offsets = [0, 0], sizes = [2, 32], strides = [1, 1]} : vector<2x128xf32> to vector<2x32xf32>
    %249 = vector.extract_strided_slice %247 {offsets = [0, 32], sizes = [2, 32], strides = [1, 1]} : vector<2x128xf32> to vector<2x32xf32>
    %250 = vector.extract_strided_slice %247 {offsets = [0, 64], sizes = [2, 32], strides = [1, 1]} : vector<2x128xf32> to vector<2x32xf32>
    %251 = vector.extract_strided_slice %247 {offsets = [0, 96], sizes = [2, 32], strides = [1, 1]} : vector<2x128xf32> to vector<2x32xf32>
    %252 = arith.mulf %249, %223 : vector<2x32xf32>
    %253 = arith.mulf %248, %250 : vector<2x32xf32>
    %254 = arith.addf %252, %253 : vector<2x32xf32>
    %255 = math.tanh %254 : vector<2x32xf32>
    %256 = arith.mulf %251, %255 : vector<2x32xf32>
    %c1_i32_73 = arith.constant 1 : i32
    %257 = arith.subi %c7_i32, %c1_i32_73 : i32
    %c0_i32_74 = arith.constant 0 : i32
    %258 = arith.maxsi %257, %c0_i32_74 : i32
    %259 = vector.extract_strided_slice %235 {offsets = [0, 128], sizes = [2, 128], strides = [1, 1]} : vector<2x256xf32> to vector<2x128xf32>
    %260 = vector.broadcast %14 : vector<1x128xf32> to vector<2x128xf32>
    %261 = arith.addf %259, %260 : vector<2x128xf32>
    %c2_i32_75 = arith.constant 2 : i32
    %262 = arith.muli %258, %c2_i32_75 : i32
    %263 = arith.index_cast %262 : i32 to index
    %c0_76 = arith.constant 0 : index
    %264 = vector.load %arg7[%263, %c0_76] : memref<16x128xf32, #tpu.memory_space<vmem>>, vector<2x128xf32>
    tpu.vector_store %arg7[%263, %c0_76], %261 {strides = array<i32>} : memref<16x128xf32, #tpu.memory_space<vmem>>, vector<2x128xf32>,
    %c8_i32 = arith.constant 8 : i32
    %265 = arith.truncf %256 : vector<2x32xf32> to vector<2x32xbf16>
    %266 = vector.extract_strided_slice %13 {offsets = [0, 128], sizes = [32, 128], strides = [1, 1]} : vector<32x256xbf16> to vector<32x128xbf16>
    %cst_77 = arith.constant dense<0.000000e+00> : vector<2x128xf32>
    %267 = tpu.matmul %265, %266, %cst_77 {dimension_numbers = #tpu.dot_dimension_numbers<[1], [0], [0], [1], [0, 0, 1, 1], [], []>} : vector<2x32xbf16>, vector<32x128xbf16>, vector<2x128xf32> -> vector<2x128xf32>
    %268 = vector.broadcast %14 : vector<1x128xf32> to vector<2x128xf32>
    %269 = arith.addf %267, %268 : vector<2x128xf32>
    %c14 = arith.constant 14 : index
    %c0_78 = arith.constant 0 : index
    %270 = vector.load %arg7[%c14, %c0_78] : memref<16x128xf32, #tpu.memory_space<vmem>>, vector<2x128xf32>
    tpu.vector_store %arg7[%c14, %c0_78], %269 {strides = array<i32>} : memref<16x128xf32, #tpu.memory_space<vmem>>, vector<2x128xf32>,
    %c0_79 = arith.constant 0 : index
    %c0_80 = arith.constant 0 : index
    %271 = vector.load %arg5[%c0_79, %c0_80] : memref<32x128xbf16, #tpu.memory_space<vmem>>, vector<32x128xbf16>
    %cst_81 = arith.constant 0.000000e+00 : f32
    %272 = vector.broadcast %cst_81 : f32 to vector<2x32xf32>
    %cst_82 = arith.constant 0.000000e+00 : f32
    %273 = vector.broadcast %cst_82 : f32 to vector<2x32xf32>
    %c0_i32_83 = arith.constant 0 : i32
    %274 = arith.truncf %272 : vector<2x32xf32> to vector<2x32xbf16>
    %cst_84 = arith.constant dense<0.000000e+00> : vector<2x128xf32>
    %275 = tpu.matmul %274, %271, %cst_84 {dimension_numbers = #tpu.dot_dimension_numbers<[1], [0], [0], [1], [0, 0, 1, 1], [], []>} : vector<2x32xbf16>, vector<32x128xbf16>, vector<2x128xf32> -> vector<2x128xf32>
    %c2_i32_85 = arith.constant 2 : i32
    %276 = arith.muli %c0_i32_83, %c2_i32_85 : i32
    %277 = arith.index_cast %276 : i32 to index
    %c0_86 = arith.constant 0 : index
    %278 = vector.load %arg7[%277, %c0_86] : memref<16x128xf32, #tpu.memory_space<vmem>>, vector<2x128xf32>
    %279 = arith.addf %278, %275 : vector<2x128xf32>
    %280 = math.tanh %279 : vector<2x128xf32>
    %281 = arith.negf %279 : vector<2x128xf32>
    %282 = math.exp %281 : vector<2x128xf32>
    %cst_87 = arith.constant 1.000000e+00 : f32
    %283 = vector.broadcast %cst_87 : f32 to vector<2x128xf32>
    %284 = arith.addf %283, %282 : vector<2x128xf32>
    %285 = arith.divf %283, %284 : vector<2x128xf32>
    %286 = arith.select %12, %280, %285 : vector<2x128xi1>, vector<2x128xf32>
    %287 = vector.extract_strided_slice %286 {offsets = [0, 0], sizes = [2, 32], strides = [1, 1]} : vector<2x128xf32> to vector<2x32xf32>
    %288 = vector.extract_strided_slice %286 {offsets = [0, 32], sizes = [2, 32], strides = [1, 1]} : vector<2x128xf32> to vector<2x32xf32>
    %289 = vector.extract_strided_slice %286 {offsets = [0, 64], sizes = [2, 32], strides = [1, 1]} : vector<2x128xf32> to vector<2x32xf32>
    %290 = vector.extract_strided_slice %286 {offsets = [0, 96], sizes = [2, 32], strides = [1, 1]} : vector<2x128xf32> to vector<2x32xf32>
    %291 = arith.mulf %288, %273 : vector<2x32xf32>
    %292 = arith.mulf %287, %289 : vector<2x32xf32>
    %293 = arith.addf %291, %292 : vector<2x32xf32>
    %294 = math.tanh %293 : vector<2x32xf32>
    %295 = arith.mulf %290, %294 : vector<2x32xf32>
    %c1_i32_88 = arith.constant 1 : i32
    %296 = arith.truncf %295 : vector<2x32xf32> to vector<2x32xbf16>
    %cst_89 = arith.constant dense<0.000000e+00> : vector<2x128xf32>
    %297 = tpu.matmul %296, %271, %cst_89 {dimension_numbers = #tpu.dot_dimension_numbers<[1], [0], [0], [1], [0, 0, 1, 1], [], []>} : vector<2x32xbf16>, vector<32x128xbf16>, vector<2x128xf32> -> vector<2x128xf32>
    %c2_i32_90 = arith.constant 2 : i32
    %298 = arith.muli %c1_i32_88, %c2_i32_90 : i32
    %299 = arith.index_cast %298 : i32 to index
    %c0_91 = arith.constant 0 : index
    %300 = vector.load %arg7[%299, %c0_91] : memref<16x128xf32, #tpu.memory_space<vmem>>, vector<2x128xf32>
    %301 = arith.addf %300, %297 : vector<2x128xf32>
    %302 = math.tanh %301 : vector<2x128xf32>
    %303 = arith.negf %301 : vector<2x128xf32>
    %304 = math.exp %303 : vector<2x128xf32>
    %cst_92 = arith.constant 1.000000e+00 : f32
    %305 = vector.broadcast %cst_92 : f32 to vector<2x128xf32>
    %306 = arith.addf %305, %304 : vector<2x128xf32>
    %307 = arith.divf %305, %306 : vector<2x128xf32>
    %308 = arith.select %12, %302, %307 : vector<2x128xi1>, vector<2x128xf32>
    %309 = vector.extract_strided_slice %308 {offsets = [0, 0], sizes = [2, 32], strides = [1, 1]} : vector<2x128xf32> to vector<2x32xf32>
    %310 = vector.extract_strided_slice %308 {offsets = [0, 32], sizes = [2, 32], strides = [1, 1]} : vector<2x128xf32> to vector<2x32xf32>
    %311 = vector.extract_strided_slice %308 {offsets = [0, 64], sizes = [2, 32], strides = [1, 1]} : vector<2x128xf32> to vector<2x32xf32>
    %312 = vector.extract_strided_slice %308 {offsets = [0, 96], sizes = [2, 32], strides = [1, 1]} : vector<2x128xf32> to vector<2x32xf32>
    %313 = arith.mulf %310, %293 : vector<2x32xf32>
    %314 = arith.mulf %309, %311 : vector<2x32xf32>
    %315 = arith.addf %313, %314 : vector<2x32xf32>
    %316 = math.tanh %315 : vector<2x32xf32>
    %317 = arith.mulf %312, %316 : vector<2x32xf32>
    %c2_i32_93 = arith.constant 2 : i32
    %318 = arith.truncf %317 : vector<2x32xf32> to vector<2x32xbf16>
    %cst_94 = arith.constant dense<0.000000e+00> : vector<2x128xf32>
    %319 = tpu.matmul %318, %271, %cst_94 {dimension_numbers = #tpu.dot_dimension_numbers<[1], [0], [0], [1], [0, 0, 1, 1], [], []>} : vector<2x32xbf16>, vector<32x128xbf16>, vector<2x128xf32> -> vector<2x128xf32>
    %c2_i32_95 = arith.constant 2 : i32
    %320 = arith.muli %c2_i32_93, %c2_i32_95 : i32
    %321 = arith.index_cast %320 : i32 to index
    %c0_96 = arith.constant 0 : index
    %322 = vector.load %arg7[%321, %c0_96] : memref<16x128xf32, #tpu.memory_space<vmem>>, vector<2x128xf32>
    %323 = arith.addf %322, %319 : vector<2x128xf32>
    %324 = math.tanh %323 : vector<2x128xf32>
    %325 = arith.negf %323 : vector<2x128xf32>
    %326 = math.exp %325 : vector<2x128xf32>
    %cst_97 = arith.constant 1.000000e+00 : f32
    %327 = vector.broadcast %cst_97 : f32 to vector<2x128xf32>
    %328 = arith.addf %327, %326 : vector<2x128xf32>
    %329 = arith.divf %327, %328 : vector<2x128xf32>
    %330 = arith.select %12, %324, %329 : vector<2x128xi1>, vector<2x128xf32>
    %331 = vector.extract_strided_slice %330 {offsets = [0, 0], sizes = [2, 32], strides = [1, 1]} : vector<2x128xf32> to vector<2x32xf32>
    %332 = vector.extract_strided_slice %330 {offsets = [0, 32], sizes = [2, 32], strides = [1, 1]} : vector<2x128xf32> to vector<2x32xf32>
    %333 = vector.extract_strided_slice %330 {offsets = [0, 64], sizes = [2, 32], strides = [1, 1]} : vector<2x128xf32> to vector<2x32xf32>
    %334 = vector.extract_strided_slice %330 {offsets = [0, 96], sizes = [2, 32], strides = [1, 1]} : vector<2x128xf32> to vector<2x32xf32>
    %335 = arith.mulf %332, %315 : vector<2x32xf32>
    %336 = arith.mulf %331, %333 : vector<2x32xf32>
    %337 = arith.addf %335, %336 : vector<2x32xf32>
    %338 = math.tanh %337 : vector<2x32xf32>
    %339 = arith.mulf %334, %338 : vector<2x32xf32>
    %c3_i32_98 = arith.constant 3 : i32
    %340 = arith.truncf %339 : vector<2x32xf32> to vector<2x32xbf16>
    %cst_99 = arith.constant dense<0.000000e+00> : vector<2x128xf32>
    %341 = tpu.matmul %340, %271, %cst_99 {dimension_numbers = #tpu.dot_dimension_numbers<[1], [0], [0], [1], [0, 0, 1, 1], [], []>} : vector<2x32xbf16>, vector<32x128xbf16>, vector<2x128xf32> -> vector<2x128xf32>
    %c2_i32_100 = arith.constant 2 : i32
    %342 = arith.muli %c3_i32_98, %c2_i32_100 : i32
    %343 = arith.index_cast %342 : i32 to index
    %c0_101 = arith.constant 0 : index
    %344 = vector.load %arg7[%343, %c0_101] : memref<16x128xf32, #tpu.memory_space<vmem>>, vector<2x128xf32>
    %345 = arith.addf %344, %341 : vector<2x128xf32>
    %346 = math.tanh %345 : vector<2x128xf32>
    %347 = arith.negf %345 : vector<2x128xf32>
    %348 = math.exp %347 : vector<2x128xf32>
    %cst_102 = arith.constant 1.000000e+00 : f32
    %349 = vector.broadcast %cst_102 : f32 to vector<2x128xf32>
    %350 = arith.addf %349, %348 : vector<2x128xf32>
    %351 = arith.divf %349, %350 : vector<2x128xf32>
    %352 = arith.select %12, %346, %351 : vector<2x128xi1>, vector<2x128xf32>
    %353 = vector.extract_strided_slice %352 {offsets = [0, 0], sizes = [2, 32], strides = [1, 1]} : vector<2x128xf32> to vector<2x32xf32>
    %354 = vector.extract_strided_slice %352 {offsets = [0, 32], sizes = [2, 32], strides = [1, 1]} : vector<2x128xf32> to vector<2x32xf32>
    %355 = vector.extract_strided_slice %352 {offsets = [0, 64], sizes = [2, 32], strides = [1, 1]} : vector<2x128xf32> to vector<2x32xf32>
    %356 = vector.extract_strided_slice %352 {offsets = [0, 96], sizes = [2, 32], strides = [1, 1]} : vector<2x128xf32> to vector<2x32xf32>
    %357 = arith.mulf %354, %337 : vector<2x32xf32>
    %358 = arith.mulf %353, %355 : vector<2x32xf32>
    %359 = arith.addf %357, %358 : vector<2x32xf32>
    %360 = math.tanh %359 : vector<2x32xf32>
    %361 = arith.mulf %356, %360 : vector<2x32xf32>
    %c4_i32_103 = arith.constant 4 : i32
    %362 = arith.truncf %361 : vector<2x32xf32> to vector<2x32xbf16>
    %cst_104 = arith.constant dense<0.000000e+00> : vector<2x128xf32>
    %363 = tpu.matmul %362, %271, %cst_104 {dimension_numbers = #tpu.dot_dimension_numbers<[1], [0], [0], [1], [0, 0, 1, 1], [], []>} : vector<2x32xbf16>, vector<32x128xbf16>, vector<2x128xf32> -> vector<2x128xf32>
    %c2_i32_105 = arith.constant 2 : i32
    %364 = arith.muli %c4_i32_103, %c2_i32_105 : i32
    %365 = arith.index_cast %364 : i32 to index
    %c0_106 = arith.constant 0 : index
    %366 = vector.load %arg7[%365, %c0_106] : memref<16x128xf32, #tpu.memory_space<vmem>>, vector<2x128xf32>
    %367 = arith.addf %366, %363 : vector<2x128xf32>
    %368 = math.tanh %367 : vector<2x128xf32>
    %369 = arith.negf %367 : vector<2x128xf32>
    %370 = math.exp %369 : vector<2x128xf32>
    %cst_107 = arith.constant 1.000000e+00 : f32
    %371 = vector.broadcast %cst_107 : f32 to vector<2x128xf32>
    %372 = arith.addf %371, %370 : vector<2x128xf32>
    %373 = arith.divf %371, %372 : vector<2x128xf32>
    %374 = arith.select %12, %368, %373 : vector<2x128xi1>, vector<2x128xf32>
    %375 = vector.extract_strided_slice %374 {offsets = [0, 0], sizes = [2, 32], strides = [1, 1]} : vector<2x128xf32> to vector<2x32xf32>
    %376 = vector.extract_strided_slice %374 {offsets = [0, 32], sizes = [2, 32], strides = [1, 1]} : vector<2x128xf32> to vector<2x32xf32>
    %377 = vector.extract_strided_slice %374 {offsets = [0, 64], sizes = [2, 32], strides = [1, 1]} : vector<2x128xf32> to vector<2x32xf32>
    %378 = vector.extract_strided_slice %374 {offsets = [0, 96], sizes = [2, 32], strides = [1, 1]} : vector<2x128xf32> to vector<2x32xf32>
    %379 = arith.mulf %376, %359 : vector<2x32xf32>
    %380 = arith.mulf %375, %377 : vector<2x32xf32>
    %381 = arith.addf %379, %380 : vector<2x32xf32>
    %382 = math.tanh %381 : vector<2x32xf32>
    %383 = arith.mulf %378, %382 : vector<2x32xf32>
    %c5_i32_108 = arith.constant 5 : i32
    %384 = arith.truncf %383 : vector<2x32xf32> to vector<2x32xbf16>
    %cst_109 = arith.constant dense<0.000000e+00> : vector<2x128xf32>
    %385 = tpu.matmul %384, %271, %cst_109 {dimension_numbers = #tpu.dot_dimension_numbers<[1], [0], [0], [1], [0, 0, 1, 1], [], []>} : vector<2x32xbf16>, vector<32x128xbf16>, vector<2x128xf32> -> vector<2x128xf32>
    %c2_i32_110 = arith.constant 2 : i32
    %386 = arith.muli %c5_i32_108, %c2_i32_110 : i32
    %387 = arith.index_cast %386 : i32 to index
    %c0_111 = arith.constant 0 : index
    %388 = vector.load %arg7[%387, %c0_111] : memref<16x128xf32, #tpu.memory_space<vmem>>, vector<2x128xf32>
    %389 = arith.addf %388, %385 : vector<2x128xf32>
    %390 = math.tanh %389 : vector<2x128xf32>
    %391 = arith.negf %389 : vector<2x128xf32>
    %392 = math.exp %391 : vector<2x128xf32>
    %cst_112 = arith.constant 1.000000e+00 : f32
    %393 = vector.broadcast %cst_112 : f32 to vector<2x128xf32>
    %394 = arith.addf %393, %392 : vector<2x128xf32>
    %395 = arith.divf %393, %394 : vector<2x128xf32>
    %396 = arith.select %12, %390, %395 : vector<2x128xi1>, vector<2x128xf32>
    %397 = vector.extract_strided_slice %396 {offsets = [0, 0], sizes = [2, 32], strides = [1, 1]} : vector<2x128xf32> to vector<2x32xf32>
    %398 = vector.extract_strided_slice %396 {offsets = [0, 32], sizes = [2, 32], strides = [1, 1]} : vector<2x128xf32> to vector<2x32xf32>
    %399 = vector.extract_strided_slice %396 {offsets = [0, 64], sizes = [2, 32], strides = [1, 1]} : vector<2x128xf32> to vector<2x32xf32>
    %400 = vector.extract_strided_slice %396 {offsets = [0, 96], sizes = [2, 32], strides = [1, 1]} : vector<2x128xf32> to vector<2x32xf32>
    %401 = arith.mulf %398, %381 : vector<2x32xf32>
    %402 = arith.mulf %397, %399 : vector<2x32xf32>
    %403 = arith.addf %401, %402 : vector<2x32xf32>
    %404 = math.tanh %403 : vector<2x32xf32>
    %405 = arith.mulf %400, %404 : vector<2x32xf32>
    %c6_i32_113 = arith.constant 6 : i32
    %406 = arith.truncf %405 : vector<2x32xf32> to vector<2x32xbf16>
    %cst_114 = arith.constant dense<0.000000e+00> : vector<2x128xf32>
    %407 = tpu.matmul %406, %271, %cst_114 {dimension_numbers = #tpu.dot_dimension_numbers<[1], [0], [0], [1], [0, 0, 1, 1], [], []>} : vector<2x32xbf16>, vector<32x128xbf16>, vector<2x128xf32> -> vector<2x128xf32>
    %c2_i32_115 = arith.constant 2 : i32
    %408 = arith.muli %c6_i32_113, %c2_i32_115 : i32
    %409 = arith.index_cast %408 : i32 to index
    %c0_116 = arith.constant 0 : index
    %410 = vector.load %arg7[%409, %c0_116] : memref<16x128xf32, #tpu.memory_space<vmem>>, vector<2x128xf32>
    %411 = arith.addf %410, %407 : vector<2x128xf32>
    %412 = math.tanh %411 : vector<2x128xf32>
    %413 = arith.negf %411 : vector<2x128xf32>
    %414 = math.exp %413 : vector<2x128xf32>
    %cst_117 = arith.constant 1.000000e+00 : f32
    %415 = vector.broadcast %cst_117 : f32 to vector<2x128xf32>
    %416 = arith.addf %415, %414 : vector<2x128xf32>
    %417 = arith.divf %415, %416 : vector<2x128xf32>
    %418 = arith.select %12, %412, %417 : vector<2x128xi1>, vector<2x128xf32>
    %419 = vector.extract_strided_slice %418 {offsets = [0, 0], sizes = [2, 32], strides = [1, 1]} : vector<2x128xf32> to vector<2x32xf32>
    %420 = vector.extract_strided_slice %418 {offsets = [0, 32], sizes = [2, 32], strides = [1, 1]} : vector<2x128xf32> to vector<2x32xf32>
    %421 = vector.extract_strided_slice %418 {offsets = [0, 64], sizes = [2, 32], strides = [1, 1]} : vector<2x128xf32> to vector<2x32xf32>
    %422 = vector.extract_strided_slice %418 {offsets = [0, 96], sizes = [2, 32], strides = [1, 1]} : vector<2x128xf32> to vector<2x32xf32>
    %423 = arith.mulf %420, %403 : vector<2x32xf32>
    %424 = arith.mulf %419, %421 : vector<2x32xf32>
    %425 = arith.addf %423, %424 : vector<2x32xf32>
    %426 = math.tanh %425 : vector<2x32xf32>
    %427 = arith.mulf %422, %426 : vector<2x32xf32>
    %c7_i32_118 = arith.constant 7 : i32
    %428 = arith.truncf %427 : vector<2x32xf32> to vector<2x32xbf16>
    %cst_119 = arith.constant dense<0.000000e+00> : vector<2x128xf32>
    %429 = tpu.matmul %428, %271, %cst_119 {dimension_numbers = #tpu.dot_dimension_numbers<[1], [0], [0], [1], [0, 0, 1, 1], [], []>} : vector<2x32xbf16>, vector<32x128xbf16>, vector<2x128xf32> -> vector<2x128xf32>
    %c2_i32_120 = arith.constant 2 : i32
    %430 = arith.muli %c7_i32_118, %c2_i32_120 : i32
    %431 = arith.index_cast %430 : i32 to index
    %c0_121 = arith.constant 0 : index
    %432 = vector.load %arg7[%431, %c0_121] : memref<16x128xf32, #tpu.memory_space<vmem>>, vector<2x128xf32>
    %433 = arith.addf %432, %429 : vector<2x128xf32>
    %434 = math.tanh %433 : vector<2x128xf32>
    %435 = arith.negf %433 : vector<2x128xf32>
    %436 = math.exp %435 : vector<2x128xf32>
    %cst_122 = arith.constant 1.000000e+00 : f32
    %437 = vector.broadcast %cst_122 : f32 to vector<2x128xf32>
    %438 = arith.addf %437, %436 : vector<2x128xf32>
    %439 = arith.divf %437, %438 : vector<2x128xf32>
    %440 = arith.select %12, %434, %439 : vector<2x128xi1>, vector<2x128xf32>
    %441 = vector.extract_strided_slice %440 {offsets = [0, 0], sizes = [2, 32], strides = [1, 1]} : vector<2x128xf32> to vector<2x32xf32>
    %442 = vector.extract_strided_slice %440 {offsets = [0, 32], sizes = [2, 32], strides = [1, 1]} : vector<2x128xf32> to vector<2x32xf32>
    %443 = vector.extract_strided_slice %440 {offsets = [0, 64], sizes = [2, 32], strides = [1, 1]} : vector<2x128xf32> to vector<2x32xf32>
    %444 = vector.extract_strided_slice %440 {offsets = [0, 96], sizes = [2, 32], strides = [1, 1]} : vector<2x128xf32> to vector<2x32xf32>
    %445 = arith.mulf %442, %425 : vector<2x32xf32>
    %446 = arith.mulf %441, %443 : vector<2x32xf32>
    %447 = arith.addf %445, %446 : vector<2x32xf32>
    %448 = math.tanh %447 : vector<2x32xf32>
    %449 = arith.mulf %444, %448 : vector<2x32xf32>
    %c8_i32_123 = arith.constant 8 : i32
    %c0_124 = arith.constant 0 : index
    %c0_125 = arith.constant 0 : index
    %450 = vector.load %arg6[%c0_124, %c0_125] : memref<2x32xf32, #tpu.memory_space<vmem>>, vector<2x32xf32>
    tpu.vector_store %arg6[%c0_124, %c0_125], %449 {strides = array<i32>} : memref<2x32xf32, #tpu.memory_space<vmem>>, vector<2x32xf32>,
    return
  }
}

</mosaic_0001>

<llo_original>
// kernel: encoder_forward.1
$region0: #{encoder_forward.1}
  #allocation0 [shape = 'u32[]', space=smem, size = 0x4, offset = 0x4, fixed_abs, tag = 'smem constant byte address 0x4 - core index']
  #allocation1 [shape = 'u32[144,128]{1,0:T(1,128)}', space=vmem, size = 0x12000, scoped, tag = 'internal scratch']
  #allocation2 [shape = 'f32[16,128]{1,0:T(8,128)}', space=vmem, size = 0x2000, scoped, tag = 'scratch operand']
  %s0 = inlined_call_operand.vmem [shape: f32[16,8], index: 0, kind: input, shape index: {}]
  %s1 = inlined_call_operand.vmem [shape: f32[8,128], index: 1, kind: input, shape index: {}]
  %s2 = inlined_call_operand.vmem [shape: f32[1,128], index: 2, kind: input, shape index: {}]
  %s3 = inlined_call_operand.vmem [shape: bf16[32,256], index: 3, kind: input, shape index: {}]
  %s4 = inlined_call_operand.vmem [shape: f32[1,128], index: 4, kind: input, shape index: {}]
  %s5 = inlined_call_operand.vmem [shape: bf16[32,128], index: 5, kind: input, shape index: {}]
  %s6 = inlined_call_operand.hbm [shape: f32[2,32], index: 6, kind: output, shape index: {}]
  %s7 = sld [smem:[#allocation0]]
  $region34: #{encoder_forward.1} parent=0
    _
  %s9 = ssub.s32 1, %s7
  %s10 = scalar_select 0, %s9, %s7
  $region1: #{encoder_forward.1} parent=0
    #allocation3 [shape = 'u8[1024]{0}', space=vmem, size = 0x400, scoped, tag = 'output window, operand 0, single buffered']
    #allocation4 [shape = 's32[1]{0}', space=sflag, size = 0x4, scoped, tag = 'scoped memory for encoder_forward.1']
    %11 = vsyncpa [#allocation4], 0
    // Predicated region
    $region2: #{encoder_forward.1} parent=1 // pred_check
      _
    $region3: #{encoder_forward.1} parent=1 // pred_check_branch
      %13 = sbr.rel (0) target = $region5
    $region4: #{encoder_forward.1} parent=1 // pred_region
      _
    $region5: #{encoder_forward.1} parent=1 // pred_fallthru
      _
    // Predicated region
    $region6: #{encoder_forward.1} parent=1 // pred_check
      _
    $region7: #{encoder_forward.1} parent=1 // pred_check_branch
      %15 = sbr.rel (0) target = $region9
    $region8: #{encoder_forward.1} parent=1 // pred_region
      _
    $region9: #{encoder_forward.1} parent=1 // pred_fallthru
      _
    // Predicated region
    $region10: #{encoder_forward.1} parent=1 // pred_check
      _
    $region11: #{encoder_forward.1} parent=1 // pred_check_branch
      %17 = sbr.rel (0) target = $region13
    $region12: #{encoder_forward.1} parent=1 // pred_region
      _
    $region13: #{encoder_forward.1} parent=1 // pred_fallthru
      _
    // Predicated region
    $region14: #{encoder_forward.1} parent=1 // pred_check
      _
    $region15: #{encoder_forward.1} parent=1 // pred_check_branch
      %19 = sbr.rel (0) target = $region17
    $region16: #{encoder_forward.1} parent=1 // pred_region
      _
    $region17: #{encoder_forward.1} parent=1 // pred_fallthru
      _
    // Predicated region
    $region18: #{encoder_forward.1} parent=1 // pred_check
      _
    $region19: #{encoder_forward.1} parent=1 // pred_check_branch
      %21 = sbr.rel (0) target = $region21
    $region20: #{encoder_forward.1} parent=1 // pred_region
      _
    $region21: #{encoder_forward.1} parent=1 // pred_fallthru
      _
    // Predicated region
    $region22: #{encoder_forward.1} parent=1 // pred_check
      _
    $region23: #{encoder_forward.1} parent=1 // pred_check_branch
      %23 = sbr.rel (0) target = $region25
    $region24: #{encoder_forward.1} parent=1 // pred_region
      _
    $region25: #{encoder_forward.1} parent=1 // pred_fallthru
      _
    %v25 = vld [vmem:[%s0] sm:$0xff]
    %v26 = vld [vmem:[%s0 + $0x8] sm:$0xff]
    %v27 = vld [vmem:[%s1] sm:$0xff]
    %v28 = vld [vmem:[%s2] sm:$0x1]
    %v30 = vlaneseq
    %v31 = vshrl.u32 %v30, 7
    %v32 = vsub.s32 0, %v31
    %v33 = vrot.slane %v28, %v32
    %vm35 = vcmask 64512
    %v37 = vsel %vm35, %v25, 0
    %v40 = vsel %vm35, %v26, 0
    %42 = vmatprep.subr.mxu0 0.0
    %43 = vmatpush1.msra.mxu0 %v27
    %44 = vmatprep.subr.mxu0 0.0
    %45 = vmatpush1.msra.mxu0 0.0
    %46 = vmatprep.subr.mxu0 0.0
    %47 = vmatpush1.msra.mxu0 0.0
    %48 = vmatprep.subr.mxu0 0.0
    %49 = vmatpush1.msra.mxu0 0.0
    %50 = vmatprep.subr.mxu0 0.0
    %51 = vmatpush1.msra.mxu0 0.0
    %52 = vmatprep.subr.mxu0 0.0
    %53 = vmatpush1.msra.mxu0 0.0
    %54 = vmatprep.subr.mxu0 0.0
    %55 = vmatpush1.msra.mxu0 0.0
    %56 = vmatprep.subr.mxu0 0.0
    %57 = vmatpush1.msra.mxu0 0.0
    %58 = vmatprep.subr.mxu0 0.0
    %59 = vmatpush1.msra.mxu0 0.0
    %60 = vmatprep.subr.mxu0 0.0
    %61 = vmatpush1.msra.mxu0 0.0
    %62 = vmatprep.subr.mxu0 0.0
    %63 = vmatpush1.msra.mxu0 0.0
    %64 = vmatprep.subr.mxu0 0.0
    %65 = vmatpush1.msra.mxu0 0.0
    %66 = vmatprep.subr.mxu0 0.0
    %67 = vmatpush1.msra.mxu0 0.0
    %68 = vmatprep.subr.mxu0 0.0
    %69 = vmatpush1.msra.mxu0 0.0
    %70 = vmatprep.subr.mxu0 0.0
    %71 = vmatpush1.msra.mxu0 0.0
    %72 = vmatprep.subr.mxu0 0.0
    %73 = vmatpush1.msra.mxu0 0.0
    %74 = vmatprep.subr.mxu0 0.0
    %75 = vmatpush1.msra.mxu0 0.0
    %76 = vmatprep.subr.mxu0 0.0
    %77 = vmatpush1.msra.mxu0 0.0
    %78 = vmatprep.subr.mxu0 0.0
    %79 = vmatpush1.msra.mxu0 0.0
    %80 = vmatprep.subr.mxu0 0.0
    %81 = vmatpush1.msra.mxu0 0.0
    %82 = vmatprep.subr.mxu0 0.0
    %83 = vmatpush1.msra.mxu0 0.0
    %84 = vmatprep.subr.mxu0 0.0
    %85 = vmatpush1.msra.mxu0 0.0
    %86 = vmatprep.subr.mxu0 0.0
    %87 = vmatpush1.msra.mxu0 0.0
    %88 = vmatprep.subr.mxu0 0.0
    %89 = vmatpush1.msra.mxu0 0.0
    %90 = vmatprep.subr.mxu0 0.0
    %91 = vmatpush1.msra.mxu0 0.0
    %92 = vmatprep.subr.mxu0 0.0
    %93 = vmatpush1.msra.mxu0 0.0
    %94 = vmatprep.subr.mxu0 0.0
    %95 = vmatpush1.msra.mxu0 0.0
    %96 = vmatprep.subr.mxu0 0.0
    %97 = vmatpush1.msra.mxu0 0.0
    %98 = vmatprep.subr.mxu0 0.0
    %99 = vmatpush1.msra.mxu0 0.0
    %100 = vmatprep.subr.mxu0 0.0
    %101 = vmatpush1.msra.mxu0 0.0
    %102 = vmatprep.subr.mxu0 0.0
    %103 = vmatpush1.msra.mxu0 0.0
    %104 = vmatprep.subr.mxu0 0.0
    %105 = vmatpush1.msra.mxu0 0.0
    %106 = vmatprep.mubr.f32.mxu0 0.0
    %107 = vmatmul.mubr.f32.gmra.mrb[0].mxu0 %v37
    %v108 = vpop.f32.mrb[0].mxu0
    %v109 = vadd.f32 %v33, %v108
    %v110 = vpop.f32.mrb[0].mxu0
    %111 = vmatprep.mubr.f32.mxu0 0.0
    %112 = vmatmul.mubr.f32.gmra.mrb[0].mxu0 %v40
    %v113 = vpop.f32.mrb[0].mxu0
    %v114 = vadd.f32 %v33, %v113
    %v115 = vpop.f32.mrb[0].mxu0
    %116 = vdwg.mxu0
    %117 = vst [vmem:[#allocation2] sm:$0xff] %v109
    %118 = vst [vmem:[#allocation2 + $0x8] sm:$0xff] %v114
    %v119 = vlaneseq
    %v120 = vand.u32 %v119, 127
    %vm121 = vcmp.ge.s32.totalorder %v120, 64
    %vm122 = vcmp.lt.s32.totalorder %v120, 96
    %vm123 = vmand %vm121, %vm122
    %v124 = vld [vmem:[%s3] sm:$0xff]
    %v125 = vld [vmem:[%s3 + $0x8] sm:$0xff]
    %v126 = vld [vmem:[%s3 + $0x10] sm:$0xff]
    %v127 = vld [vmem:[%s3 + $0x18] sm:$0xff]
    %v128 = vld [vmem:[%s4] sm:$0x1]
    %v133 = vunpack.c.l.b16 %v124
    %v134 = vunpack.c.h.b16 %v124
    %v135 = vunpack.c.l.b16 %v125
    %v136 = vunpack.c.h.b16 %v125
    %v137 = vunpack.c.l.b16 %v126
    %v138 = vunpack.c.h.b16 %v126
    %v139 = vunpack.c.l.b16 %v127
    %v140 = vunpack.c.h.b16 %v127
    %v141 = vpack.c.b16 %v135, %v133
    %v142 = vpack.c.b16 %v136, %v134
    %v143 = vpack.c.b16 %v139, %v137
    %v144 = vpack.c.b16 %v140, %v138
    %vm149 = vcmask 261120
    %v151 = vsel %vm149, 0, 0
    %153 = vmatprep.subr.bf16.mxu0 %v142
    %154 = vmatpush1.bf16.msra.mxu0 %v141
    %155 = vmatprep.subr.bf16.mxu0 %v144
    %156 = vmatpush1.bf16.msra.mxu0 %v143
    %157 = vmatprep.subr.bf16.mxu0 0
    %158 = vmatpush1.bf16.msra.mxu0 0
    %159 = vmatprep.subr.bf16.mxu0 0
    %160 = vmatpush1.bf16.msra.mxu0 0
    %161 = vmatprep.subr.bf16.mxu0 0
    %162 = vmatpush1.bf16.msra.mxu0 0
    %163 = vmatprep.subr.bf16.mxu0 0
    %164 = vmatpush1.bf16.msra.mxu0 0
    %165 = vmatprep.subr.bf16.mxu0 0
    %166 = vmatpush1.bf16.msra.mxu0 0
    %167 = vmatprep.subr.bf16.mxu0 0
    %168 = vmatpush1.bf16.msra.mxu0 0
    %169 = vmatprep.subr.bf16.mxu0 0
    %170 = vmatpush1.bf16.msra.mxu0 0
    %171 = vmatprep.subr.bf16.mxu0 0
    %172 = vmatpush1.bf16.msra.mxu0 0
    %173 = vmatprep.subr.bf16.mxu0 0
    %174 = vmatpush1.bf16.msra.mxu0 0
    %175 = vmatprep.subr.bf16.mxu0 0
    %176 = vmatpush1.bf16.msra.mxu0 0
    %177 = vmatprep.subr.bf16.mxu0 0
    %178 = vmatpush1.bf16.msra.mxu0 0
    %179 = vmatprep.subr.bf16.mxu0 0
    %180 = vmatpush1.bf16.msra.mxu0 0
    %181 = vmatprep.subr.bf16.mxu0 0
    %182 = vmatpush1.bf16.msra.mxu0 0
    %183 = vmatprep.subr.bf16.mxu0 0
    %184 = vmatpush1.bf16.msra.mxu0 0
    %185 = vmatprep.mubr.bf16.mxu0 0
    %186 = vmatmul.mubr.bf16.gmra.mrb[0].mxu0 %v151
    %v187 = vpop.f32.mrb[0].mxu0
    %v188 = vadd.f32 0.0, %v187
    %v189 = vpop.f32.mrb[0].mxu0
    %v190 = vadd.f32 0.0, %v189
    %v191 = vpop.f32.mrb[0].mxu0
    %v192 = vpop.f32.mrb[0].mxu0
    %193 = vdwg.mxu0
    %v194 = vld [vmem:[#allocation2] sm:$0x3]
    %v195 = vadd.f32 %v194, %v188
    %v196 = vtanh.pop %v195
    %v197 = vxor.u32 %v195, 2147483648
    %v198 = vmul.f32 %v197, 1.442695
    %v199 = vpow.pop %v198
    %v200 = vadd.f32 %v199, 1.0
    %v201 = vrcp.pop %v200
    %v202 = vmul.f32 1.0, %v201
    %v203 = vsel %vm123, %v196, %v202
    %v204 = vmul.f32 %v203, 0.0
    %206 = vrot.lane.b32.xlu0 %v203, 64
    %v207 = vpop.permute.xlu0 %206
    %v209 = vmul.f32 %v203, %v207
    %211 = vrot.lane.b32.xlu0 %v209, 32
    %v212 = vpop.permute.xlu0 %211
    %v214 = vadd.f32 %v204, %v212
    %v215 = vtanh.pop %v214
    %217 = vrot.lane.b32.xlu0 %v215, 64
    %v218 = vpop.permute.xlu0 %217
    %v220 = vmul.f32 %v203, %v218
    %v222 = vlaneseq
    %v223 = vshrl.u32 %v222, 7
    %v224 = vsub.s32 0, %v223
    %v225 = vrot.slane %v128, %v224
    %v227 = vadd.f32 %v190, %v225
    %228 = vst [vmem:[#allocation2] sm:$0x3] %v227
    %v229 = vpack.c.bf16 %v220, %v220
    %231 = vrot.lane.b32.xlu0 %v229, 32
    %v232 = vpop.permute.xlu0 %231
    %v234 = vsel %vm149, %v232, 0
    %236 = vmatprep.subr.bf16.mxu0 %v142
    %237 = vmatpush1.bf16.msra.mxu0 %v141
    %238 = vmatprep.subr.bf16.mxu0 %v144
    %239 = vmatpush1.bf16.msra.mxu0 %v143
    %240 = vmatprep.subr.bf16.mxu0 0
    %241 = vmatpush1.bf16.msra.mxu0 0
    %242 = vmatprep.subr.bf16.mxu0 0
    %243 = vmatpush1.bf16.msra.mxu0 0
    %244 = vmatprep.subr.bf16.mxu0 0
    %245 = vmatpush1.bf16.msra.mxu0 0
    %246 = vmatprep.subr.bf16.mxu0 0
    %247 = vmatpush1.bf16.msra.mxu0 0
    %248 = vmatprep.subr.bf16.mxu0 0
    %249 = vmatpush1.bf16.msra.mxu0 0
    %250 = vmatprep.subr.bf16.mxu0 0
    %251 = vmatpush1.bf16.msra.mxu0 0
    %252 = vmatprep.subr.bf16.mxu0 0
    %253 = vmatpush1.bf16.msra.mxu0 0
    %254 = vmatprep.subr.bf16.mxu0 0
    %255 = vmatpush1.bf16.msra.mxu0 0
    %256 = vmatprep.subr.bf16.mxu0 0
    %257 = vmatpush1.bf16.msra.mxu0 0
    %258 = vmatprep.subr.bf16.mxu0 0
    %259 = vmatpush1.bf16.msra.mxu0 0
    %260 = vmatprep.subr.bf16.mxu0 0
    %261 = vmatpush1.bf16.msra.mxu0 0
    %262 = vmatprep.subr.bf16.mxu0 0
    %263 = vmatpush1.bf16.msra.mxu0 0
    %264 = vmatprep.subr.bf16.mxu0 0
    %265 = vmatpush1.bf16.msra.mxu0 0
    %266 = vmatprep.subr.bf16.mxu0 0
    %267 = vmatpush1.bf16.msra.mxu0 0
    %268 = vmatprep.mubr.bf16.mxu0 0
    %269 = vmatmul.mubr.bf16.gmra.mrb[0].mxu0 %v234
    %v270 = vpop.f32.mrb[0].mxu0
    %v271 = vadd.f32 0.0, %v270
    %v272 = vpop.f32.mrb[0].mxu0
    %v273 = vadd.f32 0.0, %v272
    %v274 = vpop.f32.mrb[0].mxu0
    %v275 = vpop.f32.mrb[0].mxu0
    %276 = vdwg.mxu0
    %v277 = vld [vmem:[#allocation2 + $0x2] sm:$0x3]
    %v278 = vadd.f32 %v277, %v271
    %v279 = vtanh.pop %v278
    %v280 = vxor.u32 %v278, 2147483648
    %v281 = vmul.f32 %v280, 1.442695
    %v282 = vpow.pop %v281
    %v283 = vadd.f32 %v282, 1.0
    %v284 = vrcp.pop %v283
    %v285 = vmul.f32 1.0, %v284
    %v286 = vsel %vm123, %v279, %v285
    %v287 = vmul.f32 %v286, %v214
    %289 = vrot.lane.b32.xlu0 %v286, 64
    %v290 = vpop.permute.xlu0 %289
    %v292 = vmul.f32 %v286, %v290
    %294 = vrot.lane.b32.xlu0 %v292, 32
    %v295 = vpop.permute.xlu0 %294
    %v297 = vadd.f32 %v287, %v295
    %v298 = vtanh.pop %v297
    %300 = vrot.lane.b32.xlu0 %v298, 64
    %v301 = vpop.permute.xlu0 %300
    %v303 = vmul.f32 %v286, %v301
    %v304 = vadd.f32 %v273, %v225
    %305 = vst [vmem:[#allocation2] sm:$0x3] %v304
    %v306 = vpack.c.bf16 %v303, %v303
    %308 = vrot.lane.b32.xlu0 %v306, 32
    %v309 = vpop.permute.xlu0 %308
    %v311 = vsel %vm149, %v309, 0
    %313 = vmatprep.subr.bf16.mxu0 %v142
    %314 = vmatpush1.bf16.msra.mxu0 %v141
    %315 = vmatprep.subr.bf16.mxu0 %v144
    %316 = vmatpush1.bf16.msra.mxu0 %v143
    %317 = vmatprep.subr.bf16.mxu0 0
    %318 = vmatpush1.bf16.msra.mxu0 0
    %319 = vmatprep.subr.bf16.mxu0 0
    %320 = vmatpush1.bf16.msra.mxu0 0
    %321 = vmatprep.subr.bf16.mxu0 0
    %322 = vmatpush1.bf16.msra.mxu0 0
    %323 = vmatprep.subr.bf16.mxu0 0
    %324 = vmatpush1.bf16.msra.mxu0 0
    %325 = vmatprep.subr.bf16.mxu0 0
    %326 = vmatpush1.bf16.msra.mxu0 0
    %327 = vmatprep.subr.bf16.mxu0 0
    %328 = vmatpush1.bf16.msra.mxu0 0
    %329 = vmatprep.subr.bf16.mxu0 0
    %330 = vmatpush1.bf16.msra.mxu0 0
    %331 = vmatprep.subr.bf16.mxu0 0
    %332 = vmatpush1.bf16.msra.mxu0 0
    %333 = vmatprep.subr.bf16.mxu0 0
    %334 = vmatpush1.bf16.msra.mxu0 0
    %335 = vmatprep.subr.bf16.mxu0 0
    %336 = vmatpush1.bf16.msra.mxu0 0
    %337 = vmatprep.subr.bf16.mxu0 0
    %338 = vmatpush1.bf16.msra.mxu0 0
    %339 = vmatprep.subr.bf16.mxu0 0
    %340 = vmatpush1.bf16.msra.mxu0 0
    %341 = vmatprep.subr.bf16.mxu0 0
    %342 = vmatpush1.bf16.msra.mxu0 0
    %343 = vmatprep.subr.bf16.mxu0 0
    %344 = vmatpush1.bf16.msra.mxu0 0
    %345 = vmatprep.mubr.bf16.mxu0 0
    %346 = vmatmul.mubr.bf16.gmra.mrb[0].mxu0 %v311
    %v347 = vpop.f32.mrb[0].mxu0
    %v348 = vadd.f32 0.0, %v347
    %v349 = vpop.f32.mrb[0].mxu0
    %v350 = vadd.f32 0.0, %v349
    %v351 = vpop.f32.mrb[0].mxu0
    %v352 = vpop.f32.mrb[0].mxu0
    %353 = vdwg.mxu0
    %v354 = vld [vmem:[#allocation2 + $0x4] sm:$0x3]
    %v355 = vadd.f32 %v354, %v348
    %v356 = vtanh.pop %v355
    %v357 = vxor.u32 %v355, 2147483648
    %v358 = vmul.f32 %v357, 1.442695
    %v359 = vpow.pop %v358
    %v360 = vadd.f32 %v359, 1.0
    %v361 = vrcp.pop %v360
    %v362 = vmul.f32 1.0, %v361
    %v363 = vsel %vm123, %v356, %v362
    %v364 = vmul.f32 %v363, %v297
    %366 = vrot.lane.b32.xlu0 %v363, 64
    %v367 = vpop.permute.xlu0 %366
    %v369 = vmul.f32 %v363, %v367
    %371 = vrot.lane.b32.xlu0 %v369, 32
    %v372 = vpop.permute.xlu0 %371
    %v374 = vadd.f32 %v364, %v372
    %v375 = vtanh.pop %v374
    %377 = vrot.lane.b32.xlu0 %v375, 64
    %v378 = vpop.permute.xlu0 %377
    %v380 = vmul.f32 %v363, %v378
    %v381 = vadd.f32 %v350, %v225
    %382 = vst [vmem:[#allocation2 + $0x2] sm:$0x3] %v381
    %v383 = vpack.c.bf16 %v380, %v380
    %385 = vrot.lane.b32.xlu0 %v383, 32
    %v386 = vpop.permute.xlu0 %385
    %v388 = vsel %vm149, %v386, 0
    %390 = vmatprep.subr.bf16.mxu0 %v142
    %391 = vmatpush1.bf16.msra.mxu0 %v141
    %392 = vmatprep.subr.bf16.mxu0 %v144
    %393 = vmatpush1.bf16.msra.mxu0 %v143
    %394 = vmatprep.subr.bf16.mxu0 0
    %395 = vmatpush1.bf16.msra.mxu0 0
    %396 = vmatprep.subr.bf16.mxu0 0
    %397 = vmatpush1.bf16.msra.mxu0 0
    %398 = vmatprep.subr.bf16.mxu0 0
    %399 = vmatpush1.bf16.msra.mxu0 0
    %400 = vmatprep.subr.bf16.mxu0 0
    %401 = vmatpush1.bf16.msra.mxu0 0
    %402 = vmatprep.subr.bf16.mxu0 0
    %403 = vmatpush1.bf16.msra.mxu0 0
    %404 = vmatprep.subr.bf16.mxu0 0
    %405 = vmatpush1.bf16.msra.mxu0 0
    %406 = vmatprep.subr.bf16.mxu0 0
    %407 = vmatpush1.bf16.msra.mxu0 0
    %408 = vmatprep.subr.bf16.mxu0 0
    %409 = vmatpush1.bf16.msra.mxu0 0
    %410 = vmatprep.subr.bf16.mxu0 0
    %411 = vmatpush1.bf16.msra.mxu0 0
    %412 = vmatprep.subr.bf16.mxu0 0
    %413 = vmatpush1.bf16.msra.mxu0 0
    %414 = vmatprep.subr.bf16.mxu0 0
    %415 = vmatpush1.bf16.msra.mxu0 0
    %416 = vmatprep.subr.bf16.mxu0 0
    %417 = vmatpush1.bf16.msra.mxu0 0
    %418 = vmatprep.subr.bf16.mxu0 0
    %419 = vmatpush1.bf16.msra.mxu0 0
    %420 = vmatprep.subr.bf16.mxu0 0
    %421 = vmatpush1.bf16.msra.mxu0 0
    %422 = vmatprep.mubr.bf16.mxu0 0
    %423 = vmatmul.mubr.bf16.gmra.mrb[0].mxu0 %v388
    %v424 = vpop.f32.mrb[0].mxu0
    %v425 = vadd.f32 0.0, %v424
    %v426 = vpop.f32.mrb[0].mxu0
    %v427 = vadd.f32 0.0, %v426
    %v428 = vpop.f32.mrb[0].mxu0
    %v429 = vpop.f32.mrb[0].mxu0
    %430 = vdwg.mxu0
    %v431 = vld [vmem:[#allocation2 + $0x6] sm:$0x3]
    %v432 = vadd.f32 %v431, %v425
    %v433 = vtanh.pop %v432
    %v434 = vxor.u32 %v432, 2147483648
    %v435 = vmul.f32 %v434, 1.442695
    %v436 = vpow.pop %v435
    %v437 = vadd.f32 %v436, 1.0
    %v438 = vrcp.pop %v437
    %v439 = vmul.f32 1.0, %v438
    %v440 = vsel %vm123, %v433, %v439
    %v441 = vmul.f32 %v440, %v374
    %443 = vrot.lane.b32.xlu0 %v440, 64
    %v444 = vpop.permute.xlu0 %443
    %v446 = vmul.f32 %v440, %v444
    %448 = vrot.lane.b32.xlu0 %v446, 32
    %v449 = vpop.permute.xlu0 %448
    %v451 = vadd.f32 %v441, %v449
    %v452 = vtanh.pop %v451
    %454 = vrot.lane.b32.xlu0 %v452, 64
    %v455 = vpop.permute.xlu0 %454
    %v457 = vmul.f32 %v440, %v455
    %v458 = vadd.f32 %v427, %v225
    %459 = vst [vmem:[#allocation2 + $0x4] sm:$0x3] %v458
    %v460 = vpack.c.bf16 %v457, %v457
    %462 = vrot.lane.b32.xlu0 %v460, 32
    %v463 = vpop.permute.xlu0 %462
    %v465 = vsel %vm149, %v463, 0
    %467 = vmatprep.subr.bf16.mxu0 %v142
    %468 = vmatpush1.bf16.msra.mxu0 %v141
    %469 = vmatprep.subr.bf16.mxu0 %v144
    %470 = vmatpush1.bf16.msra.mxu0 %v143
    %471 = vmatprep.subr.bf16.mxu0 0
    %472 = vmatpush1.bf16.msra.mxu0 0
    %473 = vmatprep.subr.bf16.mxu0 0
    %474 = vmatpush1.bf16.msra.mxu0 0
    %475 = vmatprep.subr.bf16.mxu0 0
    %476 = vmatpush1.bf16.msra.mxu0 0
    %477 = vmatprep.subr.bf16.mxu0 0
    %478 = vmatpush1.bf16.msra.mxu0 0
    %479 = vmatprep.subr.bf16.mxu0 0
    %480 = vmatpush1.bf16.msra.mxu0 0
    %481 = vmatprep.subr.bf16.mxu0 0
    %482 = vmatpush1.bf16.msra.mxu0 0
    %483 = vmatprep.subr.bf16.mxu0 0
    %484 = vmatpush1.bf16.msra.mxu0 0
    %485 = vmatprep.subr.bf16.mxu0 0
    %486 = vmatpush1.bf16.msra.mxu0 0
    %487 = vmatprep.subr.bf16.mxu0 0
    %488 = vmatpush1.bf16.msra.mxu0 0
    %489 = vmatprep.subr.bf16.mxu0 0
    %490 = vmatpush1.bf16.msra.mxu0 0
    %491 = vmatprep.subr.bf16.mxu0 0
    %492 = vmatpush1.bf16.msra.mxu0 0
    %493 = vmatprep.subr.bf16.mxu0 0
    %494 = vmatpush1.bf16.msra.mxu0 0
    %495 = vmatprep.subr.bf16.mxu0 0
    %496 = vmatpush1.bf16.msra.mxu0 0
    %497 = vmatprep.subr.bf16.mxu0 0
    %498 = vmatpush1.bf16.msra.mxu0 0
    %499 = vmatprep.mubr.bf16.mxu0 0
    %500 = vmatmul.mubr.bf16.gmra.mrb[0].mxu0 %v465
    %v501 = vpop.f32.mrb[0].mxu0
    %v502 = vadd.f32 0.0, %v501
    %v503 = vpop.f32.mrb[0].mxu0
    %v504 = vadd.f32 0.0, %v503
    %v505 = vpop.f32.mrb[0].mxu0
    %v506 = vpop.f32.mrb[0].mxu0
    %507 = vdwg.mxu0
    %v508 = vld [vmem:[#allocation2 + $0x8] sm:$0x3]
    %v509 = vadd.f32 %v508, %v502
    %v510 = vtanh.pop %v509
    %v511 = vxor.u32 %v509, 2147483648
    %v512 = vmul.f32 %v511, 1.442695
    %v513 = vpow.pop %v512
    %v514 = vadd.f32 %v513, 1.0
    %v515 = vrcp.pop %v514
    %v516 = vmul.f32 1.0, %v515
    %v517 = vsel %vm123, %v510, %v516
    %v518 = vmul.f32 %v517, %v451
    %520 = vrot.lane.b32.xlu0 %v517, 64
    %v521 = vpop.permute.xlu0 %520
    %v523 = vmul.f32 %v517, %v521
    %525 = vrot.lane.b32.xlu0 %v523, 32
    %v526 = vpop.permute.xlu0 %525
    %v528 = vadd.f32 %v518, %v526
    %v529 = vtanh.pop %v528
    %531 = vrot.lane.b32.xlu0 %v529, 64
    %v532 = vpop.permute.xlu0 %531
    %v534 = vmul.f32 %v517, %v532
    %v535 = vadd.f32 %v504, %v225
    %536 = vst [vmem:[#allocation2 + $0x6] sm:$0x3] %v535
    %v537 = vpack.c.bf16 %v534, %v534
    %539 = vrot.lane.b32.xlu0 %v537, 32
    %v540 = vpop.permute.xlu0 %539
    %v542 = vsel %vm149, %v540, 0
    %544 = vmatprep.subr.bf16.mxu0 %v142
    %545 = vmatpush1.bf16.msra.mxu0 %v141
    %546 = vmatprep.subr.bf16.mxu0 %v144
    %547 = vmatpush1.bf16.msra.mxu0 %v143
    %548 = vmatprep.subr.bf16.mxu0 0
    %549 = vmatpush1.bf16.msra.mxu0 0
    %550 = vmatprep.subr.bf16.mxu0 0
    %551 = vmatpush1.bf16.msra.mxu0 0
    %552 = vmatprep.subr.bf16.mxu0 0
    %553 = vmatpush1.bf16.msra.mxu0 0
    %554 = vmatprep.subr.bf16.mxu0 0
    %555 = vmatpush1.bf16.msra.mxu0 0
    %556 = vmatprep.subr.bf16.mxu0 0
    %557 = vmatpush1.bf16.msra.mxu0 0
    %558 = vmatprep.subr.bf16.mxu0 0
    %559 = vmatpush1.bf16.msra.mxu0 0
    %560 = vmatprep.subr.bf16.mxu0 0
    %561 = vmatpush1.bf16.msra.mxu0 0
    %562 = vmatprep.subr.bf16.mxu0 0
    %563 = vmatpush1.bf16.msra.mxu0 0
    %564 = vmatprep.subr.bf16.mxu0 0
    %565 = vmatpush1.bf16.msra.mxu0 0
    %566 = vmatprep.subr.bf16.mxu0 0
    %567 = vmatpush1.bf16.msra.mxu0 0
    %568 = vmatprep.subr.bf16.mxu0 0
    %569 = vmatpush1.bf16.msra.mxu0 0
    %570 = vmatprep.subr.bf16.mxu0 0
    %571 = vmatpush1.bf16.msra.mxu0 0
    %572 = vmatprep.subr.bf16.mxu0 0
    %573 = vmatpush1.bf16.msra.mxu0 0
    %574 = vmatprep.subr.bf16.mxu0 0
    %575 = vmatpush1.bf16.msra.mxu0 0
    %576 = vmatprep.mubr.bf16.mxu0 0
    %577 = vmatmul.mubr.bf16.gmra.mrb[0].mxu0 %v542
    %v578 = vpop.f32.mrb[0].mxu0
    %v579 = vadd.f32 0.0, %v578
    %v580 = vpop.f32.mrb[0].mxu0
    %v581 = vadd.f32 0.0, %v580
    %v582 = vpop.f32.mrb[0].mxu0
    %v583 = vpop.f32.mrb[0].mxu0
    %584 = vdwg.mxu0
    %v585 = vld [vmem:[#allocation2 + $0xa] sm:$0x3]
    %v586 = vadd.f32 %v585, %v579
    %v587 = vtanh.pop %v586
    %v588 = vxor.u32 %v586, 2147483648
    %v589 = vmul.f32 %v588, 1.442695
    %v590 = vpow.pop %v589
    %v591 = vadd.f32 %v590, 1.0
    %v592 = vrcp.pop %v591
    %v593 = vmul.f32 1.0, %v592
    %v594 = vsel %vm123, %v587, %v593
    %v595 = vmul.f32 %v594, %v528
    %597 = vrot.lane.b32.xlu0 %v594, 64
    %v598 = vpop.permute.xlu0 %597
    %v600 = vmul.f32 %v594, %v598
    %602 = vrot.lane.b32.xlu0 %v600, 32
    %v603 = vpop.permute.xlu0 %602
    %v605 = vadd.f32 %v595, %v603
    %v606 = vtanh.pop %v605
    %608 = vrot.lane.b32.xlu0 %v606, 64
    %v609 = vpop.permute.xlu0 %608
    %v611 = vmul.f32 %v594, %v609
    %v612 = vadd.f32 %v581, %v225
    %613 = vst [vmem:[#allocation2 + $0x8] sm:$0x3] %v612
    %v614 = vpack.c.bf16 %v611, %v611
    %616 = vrot.lane.b32.xlu0 %v614, 32
    %v617 = vpop.permute.xlu0 %616
    %v619 = vsel %vm149, %v617, 0
    %621 = vmatprep.subr.bf16.mxu0 %v142
    %622 = vmatpush1.bf16.msra.mxu0 %v141
    %623 = vmatprep.subr.bf16.mxu0 %v144
    %624 = vmatpush1.bf16.msra.mxu0 %v143
    %625 = vmatprep.subr.bf16.mxu0 0
    %626 = vmatpush1.bf16.msra.mxu0 0
    %627 = vmatprep.subr.bf16.mxu0 0
    %628 = vmatpush1.bf16.msra.mxu0 0
    %629 = vmatprep.subr.bf16.mxu0 0
    %630 = vmatpush1.bf16.msra.mxu0 0
    %631 = vmatprep.subr.bf16.mxu0 0
    %632 = vmatpush1.bf16.msra.mxu0 0
    %633 = vmatprep.subr.bf16.mxu0 0
    %634 = vmatpush1.bf16.msra.mxu0 0
    %635 = vmatprep.subr.bf16.mxu0 0
    %636 = vmatpush1.bf16.msra.mxu0 0
    %637 = vmatprep.subr.bf16.mxu0 0
    %638 = vmatpush1.bf16.msra.mxu0 0
    %639 = vmatprep.subr.bf16.mxu0 0
    %640 = vmatpush1.bf16.msra.mxu0 0
    %641 = vmatprep.subr.bf16.mxu0 0
    %642 = vmatpush1.bf16.msra.mxu0 0
    %643 = vmatprep.subr.bf16.mxu0 0
    %644 = vmatpush1.bf16.msra.mxu0 0
    %645 = vmatprep.subr.bf16.mxu0 0
    %646 = vmatpush1.bf16.msra.mxu0 0
    %647 = vmatprep.subr.bf16.mxu0 0
    %648 = vmatpush1.bf16.msra.mxu0 0
    %649 = vmatprep.subr.bf16.mxu0 0
    %650 = vmatpush1.bf16.msra.mxu0 0
    %651 = vmatprep.subr.bf16.mxu0 0
    %652 = vmatpush1.bf16.msra.mxu0 0
    %653 = vmatprep.mubr.bf16.mxu0 0
    %654 = vmatmul.mubr.bf16.gmra.mrb[0].mxu0 %v619
    %v655 = vpop.f32.mrb[0].mxu0
    %v656 = vadd.f32 0.0, %v655
    %v657 = vpop.f32.mrb[0].mxu0
    %v658 = vadd.f32 0.0, %v657
    %v659 = vpop.f32.mrb[0].mxu0
    %v660 = vpop.f32.mrb[0].mxu0
    %661 = vdwg.mxu0
    %v662 = vld [vmem:[#allocation2 + $0xc] sm:$0x3]
    %v663 = vadd.f32 %v662, %v656
    %v664 = vtanh.pop %v663
    %v665 = vxor.u32 %v663, 2147483648
    %v666 = vmul.f32 %v665, 1.442695
    %v667 = vpow.pop %v666
    %v668 = vadd.f32 %v667, 1.0
    %v669 = vrcp.pop %v668
    %v670 = vmul.f32 1.0, %v669
    %v671 = vsel %vm123, %v664, %v670
    %v672 = vmul.f32 %v671, %v605
    %674 = vrot.lane.b32.xlu0 %v671, 64
    %v675 = vpop.permute.xlu0 %674
    %v677 = vmul.f32 %v671, %v675
    %679 = vrot.lane.b32.xlu0 %v677, 32
    %v680 = vpop.permute.xlu0 %679
    %v682 = vadd.f32 %v672, %v680
    %v683 = vtanh.pop %v682
    %685 = vrot.lane.b32.xlu0 %v683, 64
    %v686 = vpop.permute.xlu0 %685
    %v688 = vmul.f32 %v671, %v686
    %v689 = vadd.f32 %v658, %v225
    %690 = vst [vmem:[#allocation2 + $0xa] sm:$0x3] %v689
    %v691 = vpack.c.bf16 %v688, %v688
    %693 = vrot.lane.b32.xlu0 %v691, 32
    %v694 = vpop.permute.xlu0 %693
    %v696 = vsel %vm149, %v694, 0
    %698 = vmatprep.subr.bf16.mxu0 %v142
    %699 = vmatpush1.bf16.msra.mxu0 %v141
    %700 = vmatprep.subr.bf16.mxu0 %v144
    %701 = vmatpush1.bf16.msra.mxu0 %v143
    %702 = vmatprep.subr.bf16.mxu0 0
    %703 = vmatpush1.bf16.msra.mxu0 0
    %704 = vmatprep.subr.bf16.mxu0 0
    %705 = vmatpush1.bf16.msra.mxu0 0
    %706 = vmatprep.subr.bf16.mxu0 0
    %707 = vmatpush1.bf16.msra.mxu0 0
    %708 = vmatprep.subr.bf16.mxu0 0
    %709 = vmatpush1.bf16.msra.mxu0 0
    %710 = vmatprep.subr.bf16.mxu0 0
    %711 = vmatpush1.bf16.msra.mxu0 0
    %712 = vmatprep.subr.bf16.mxu0 0
    %713 = vmatpush1.bf16.msra.mxu0 0
    %714 = vmatprep.subr.bf16.mxu0 0
    %715 = vmatpush1.bf16.msra.mxu0 0
    %716 = vmatprep.subr.bf16.mxu0 0
    %717 = vmatpush1.bf16.msra.mxu0 0
    %718 = vmatprep.subr.bf16.mxu0 0
    %719 = vmatpush1.bf16.msra.mxu0 0
    %720 = vmatprep.subr.bf16.mxu0 0
    %721 = vmatpush1.bf16.msra.mxu0 0
    %722 = vmatprep.subr.bf16.mxu0 0
    %723 = vmatpush1.bf16.msra.mxu0 0
    %724 = vmatprep.subr.bf16.mxu0 0
    %725 = vmatpush1.bf16.msra.mxu0 0
    %726 = vmatprep.subr.bf16.mxu0 0
    %727 = vmatpush1.bf16.msra.mxu0 0
    %728 = vmatprep.subr.bf16.mxu0 0
    %729 = vmatpush1.bf16.msra.mxu0 0
    %730 = vmatprep.mubr.bf16.mxu0 0
    %731 = vmatmul.mubr.bf16.gmra.mrb[0].mxu0 %v696
    %v732 = vpop.f32.mrb[0].mxu0
    %v733 = vadd.f32 0.0, %v732
    %v734 = vpop.f32.mrb[0].mxu0
    %v735 = vadd.f32 0.0, %v734
    %v736 = vpop.f32.mrb[0].mxu0
    %v737 = vpop.f32.mrb[0].mxu0
    %738 = vdwg.mxu0
    %v739 = vld [vmem:[#allocation2 + $0xe] sm:$0x3]
    %v740 = vadd.f32 %v739, %v733
    %v741 = vtanh.pop %v740
    %v742 = vxor.u32 %v740, 2147483648
    %v743 = vmul.f32 %v742, 1.442695
    %v744 = vpow.pop %v743
    %v745 = vadd.f32 %v744, 1.0
    %v746 = vrcp.pop %v745
    %v747 = vmul.f32 1.0, %v746
    %v748 = vsel %vm123, %v741, %v747
    %v749 = vmul.f32 %v748, %v682
    %751 = vrot.lane.b32.xlu0 %v748, 64
    %v752 = vpop.permute.xlu0 %751
    %v754 = vmul.f32 %v748, %v752
    %756 = vrot.lane.b32.xlu0 %v754, 32
    %v757 = vpop.permute.xlu0 %756
    %v759 = vadd.f32 %v749, %v757
    %v760 = vtanh.pop %v759
    %762 = vrot.lane.b32.xlu0 %v760, 64
    %v763 = vpop.permute.xlu0 %762
    %v765 = vmul.f32 %v748, %v763
    %v766 = vadd.f32 %v735, %v225
    %767 = vst [vmem:[#allocation2 + $0xc] sm:$0x3] %v766
    %v768 = vpack.c.bf16 %v765, %v765
    %770 = vrot.lane.b32.xlu0 %v768, 32
    %v771 = vpop.permute.xlu0 %770
    %v773 = vsel %vm149, %v771, 0
    %775 = vmatprep.subr.bf16.mxu0 0
    %776 = vmatpush1.bf16.msra.mxu0 %v142
    %777 = vmatprep.subr.bf16.mxu0 0
    %778 = vmatpush1.bf16.msra.mxu0 %v144
    %779 = vmatprep.subr.bf16.mxu0 0
    %780 = vmatpush1.bf16.msra.mxu0 0
    %781 = vmatprep.subr.bf16.mxu0 0
    %782 = vmatpush1.bf16.msra.mxu0 0
    %783 = vmatprep.subr.bf16.mxu0 0
    %784 = vmatpush1.bf16.msra.mxu0 0
    %785 = vmatprep.subr.bf16.mxu0 0
    %786 = vmatpush1.bf16.msra.mxu0 0
    %787 = vmatprep.subr.bf16.mxu0 0
    %788 = vmatpush1.bf16.msra.mxu0 0
    %789 = vmatprep.subr.bf16.mxu0 0
    %790 = vmatpush1.bf16.msra.mxu0 0
    %791 = vmatprep.subr.bf16.mxu0 0
    %792 = vmatpush1.bf16.msra.mxu0 0
    %793 = vmatprep.subr.bf16.mxu0 0
    %794 = vmatpush1.bf16.msra.mxu0 0
    %795 = vmatprep.subr.bf16.mxu0 0
    %796 = vmatpush1.bf16.msra.mxu0 0
    %797 = vmatprep.subr.bf16.mxu0 0
    %798 = vmatpush1.bf16.msra.mxu0 0
    %799 = vmatprep.subr.bf16.mxu0 0
    %800 = vmatpush1.bf16.msra.mxu0 0
    %801 = vmatprep.subr.bf16.mxu0 0
    %802 = vmatpush1.bf16.msra.mxu0 0
    %803 = vmatprep.subr.bf16.mxu0 0
    %804 = vmatpush1.bf16.msra.mxu0 0
    %805 = vmatprep.subr.bf16.mxu0 0
    %806 = vmatpush1.bf16.msra.mxu0 0
    %807 = vmatprep.mubr.bf16.mxu0 0
    %808 = vmatmul.mubr.bf16.gmra.mrb[0].mxu0 %v773
    %v809 = vpop.f32.mrb[0].mxu0
    %v810 = vadd.f32 %v225, %v809
    %v811 = vpop.f32.mrb[0].mxu0
    %v812 = vpop.f32.mrb[0].mxu0
    %v813 = vpop.f32.mrb[0].mxu0
    %814 = vdwg.mxu0
    %815 = vst [vmem:[#allocation2 + $0xe] sm:$0x3] %v810
    %v816 = vld [vmem:[%s5] sm:$0xf]
    %v817 = vld [vmem:[%s5 + $0x4] sm:$0xf]
    %v818 = vld [vmem:[%s5 + $0x8] sm:$0xf]
    %v819 = vld [vmem:[%s5 + $0xc] sm:$0xf]
    %v824 = vunpack.c.l.b16 %v816
    %v825 = vunpack.c.l.b16 %v817
    %v826 = vunpack.c.l.b16 %v818
    %v827 = vunpack.c.l.b16 %v819
    %v828 = vpack.c.b16 %v825, %v824
    %v829 = vpack.c.b16 %v827, %v826
    %832 = vmatprep.subr.bf16.mxu0 0
    %833 = vmatpush1.bf16.msra.mxu0 %v828
    %834 = vmatprep.subr.bf16.mxu0 0
    %835 = vmatpush1.bf16.msra.mxu0 %v829
    %836 = vmatprep.subr.bf16.mxu0 0
    %837 = vmatpush1.bf16.msra.mxu0 0
    %838 = vmatprep.subr.bf16.mxu0 0
    %839 = vmatpush1.bf16.msra.mxu0 0
    %840 = vmatprep.subr.bf16.mxu0 0
    %841 = vmatpush1.bf16.msra.mxu0 0
    %842 = vmatprep.subr.bf16.mxu0 0
    %843 = vmatpush1.bf16.msra.mxu0 0
    %844 = vmatprep.subr.bf16.mxu0 0
    %845 = vmatpush1.bf16.msra.mxu0 0
    %846 = vmatprep.subr.bf16.mxu0 0
    %847 = vmatpush1.bf16.msra.mxu0 0
    %848 = vmatprep.subr.bf16.mxu0 0
    %849 = vmatpush1.bf16.msra.mxu0 0
    %850 = vmatprep.subr.bf16.mxu0 0
    %851 = vmatpush1.bf16.msra.mxu0 0
    %852 = vmatprep.subr.bf16.mxu0 0
    %853 = vmatpush1.bf16.msra.mxu0 0
    %854 = vmatprep.subr.bf16.mxu0 0
    %855 = vmatpush1.bf16.msra.mxu0 0
    %856 = vmatprep.subr.bf16.mxu0 0
    %857 = vmatpush1.bf16.msra.mxu0 0
    %858 = vmatprep.subr.bf16.mxu0 0
    %859 = vmatpush1.bf16.msra.mxu0 0
    %860 = vmatprep.subr.bf16.mxu0 0
    %861 = vmatpush1.bf16.msra.mxu0 0
    %862 = vmatprep.subr.bf16.mxu0 0
    %863 = vmatpush1.bf16.msra.mxu0 0
    %864 = vmatprep.mubr.bf16.mxu0 0
    %865 = vmatmul.mubr.bf16.gmra.mrb[0].mxu0 %v151
    %v866 = vpop.f32.mrb[0].mxu0
    %v867 = vadd.f32 0.0, %v866
    %v868 = vpop.f32.mrb[0].mxu0
    %v869 = vpop.f32.mrb[0].mxu0
    %v870 = vpop.f32.mrb[0].mxu0
    %871 = vdwg.mxu0
    %v872 = vld [vmem:[#allocation2] sm:$0x3]
    %v873 = vadd.f32 %v872, %v867
    %v874 = vtanh.pop %v873
    %v875 = vxor.u32 %v873, 2147483648
    %v876 = vmul.f32 %v875, 1.442695
    %v877 = vpow.pop %v876
    %v878 = vadd.f32 %v877, 1.0
    %v879 = vrcp.pop %v878
    %v880 = vmul.f32 1.0, %v879
    %v881 = vsel %vm123, %v874, %v880
    %v882 = vmul.f32 %v881, 0.0
    %884 = vrot.lane.b32.xlu0 %v881, 64
    %v885 = vpop.permute.xlu0 %884
    %v887 = vmul.f32 %v881, %v885
    %889 = vrot.lane.b32.xlu0 %v887, 32
    %v890 = vpop.permute.xlu0 %889
    %v892 = vadd.f32 %v882, %v890
    %v893 = vtanh.pop %v892
    %895 = vrot.lane.b32.xlu0 %v893, 64
    %v896 = vpop.permute.xlu0 %895
    %v898 = vmul.f32 %v881, %v896
    %v899 = vpack.c.bf16 %v898, %v898
    %901 = vrot.lane.b32.xlu0 %v899, 32
    %v902 = vpop.permute.xlu0 %901
    %v904 = vsel %vm149, %v902, 0
    %906 = vmatprep.subr.bf16.mxu0 0
    %907 = vmatpush1.bf16.msra.mxu0 %v828
    %908 = vmatprep.subr.bf16.mxu0 0
    %909 = vmatpush1.bf16.msra.mxu0 %v829
    %910 = vmatprep.subr.bf16.mxu0 0
    %911 = vmatpush1.bf16.msra.mxu0 0
    %912 = vmatprep.subr.bf16.mxu0 0
    %913 = vmatpush1.bf16.msra.mxu0 0
    %914 = vmatprep.subr.bf16.mxu0 0
    %915 = vmatpush1.bf16.msra.mxu0 0
    %916 = vmatprep.subr.bf16.mxu0 0
    %917 = vmatpush1.bf16.msra.mxu0 0
    %918 = vmatprep.subr.bf16.mxu0 0
    %919 = vmatpush1.bf16.msra.mxu0 0
    %920 = vmatprep.subr.bf16.mxu0 0
    %921 = vmatpush1.bf16.msra.mxu0 0
    %922 = vmatprep.subr.bf16.mxu0 0
    %923 = vmatpush1.bf16.msra.mxu0 0
    %924 = vmatprep.subr.bf16.mxu0 0
    %925 = vmatpush1.bf16.msra.mxu0 0
    %926 = vmatprep.subr.bf16.mxu0 0
    %927 = vmatpush1.bf16.msra.mxu0 0
    %928 = vmatprep.subr.bf16.mxu0 0
    %929 = vmatpush1.bf16.msra.mxu0 0
    %930 = vmatprep.subr.bf16.mxu0 0
    %931 = vmatpush1.bf16.msra.mxu0 0
    %932 = vmatprep.subr.bf16.mxu0 0
    %933 = vmatpush1.bf16.msra.mxu0 0
    %934 = vmatprep.subr.bf16.mxu0 0
    %935 = vmatpush1.bf16.msra.mxu0 0
    %936 = vmatprep.subr.bf16.mxu0 0
    %937 = vmatpush1.bf16.msra.mxu0 0
    %938 = vmatprep.mubr.bf16.mxu0 0
    %939 = vmatmul.mubr.bf16.gmra.mrb[0].mxu0 %v904
    %v940 = vpop.f32.mrb[0].mxu0
    %v941 = vadd.f32 0.0, %v940
    %v942 = vpop.f32.mrb[0].mxu0
    %v943 = vpop.f32.mrb[0].mxu0
    %v944 = vpop.f32.mrb[0].mxu0
    %945 = vdwg.mxu0
    %v946 = vld [vmem:[#allocation2 + $0x2] sm:$0x3]
    %v947 = vadd.f32 %v946, %v941
    %v948 = vtanh.pop %v947
    %v949 = vxor.u32 %v947, 2147483648
    %v950 = vmul.f32 %v949, 1.442695
    %v951 = vpow.pop %v950
    %v952 = vadd.f32 %v951, 1.0
    %v953 = vrcp.pop %v952
    %v954 = vmul.f32 1.0, %v953
    %v955 = vsel %vm123, %v948, %v954
    %v956 = vmul.f32 %v955, %v892
    %958 = vrot.lane.b32.xlu0 %v955, 64
    %v959 = vpop.permute.xlu0 %958
    %v961 = vmul.f32 %v955, %v959
    %963 = vrot.lane.b32.xlu0 %v961, 32
    %v964 = vpop.permute.xlu0 %963
    %v966 = vadd.f32 %v956, %v964
    %v967 = vtanh.pop %v966
    %969 = vrot.lane.b32.xlu0 %v967, 64
    %v970 = vpop.permute.xlu0 %969
    %v972 = vmul.f32 %v955, %v970
    %v973 = vpack.c.bf16 %v972, %v972
    %975 = vrot.lane.b32.xlu0 %v973, 32
    %v976 = vpop.permute.xlu0 %975
    %v978 = vsel %vm149, %v976, 0
    %980 = vmatprep.subr.bf16.mxu0 0
    %981 = vmatpush1.bf16.msra.mxu0 %v828
    %982 = vmatprep.subr.bf16.mxu0 0
    %983 = vmatpush1.bf16.msra.mxu0 %v829
    %984 = vmatprep.subr.bf16.mxu0 0
    %985 = vmatpush1.bf16.msra.mxu0 0
    %986 = vmatprep.subr.bf16.mxu0 0
    %987 = vmatpush1.bf16.msra.mxu0 0
    %988 = vmatprep.subr.bf16.mxu0 0
    %989 = vmatpush1.bf16.msra.mxu0 0
    %990 = vmatprep.subr.bf16.mxu0 0
    %991 = vmatpush1.bf16.msra.mxu0 0
    %992 = vmatprep.subr.bf16.mxu0 0
    %993 = vmatpush1.bf16.msra.mxu0 0
    %994 = vmatprep.subr.bf16.mxu0 0
    %995 = vmatpush1.bf16.msra.mxu0 0
    %996 = vmatprep.subr.bf16.mxu0 0
    %997 = vmatpush1.bf16.msra.mxu0 0
    %998 = vmatprep.subr.bf16.mxu0 0
    %999 = vmatpush1.bf16.msra.mxu0 0
    %1000 = vmatprep.subr.bf16.mxu0 0
    %1001 = vmatpush1.bf16.msra.mxu0 0
    %1002 = vmatprep.subr.bf16.mxu0 0
    %1003 = vmatpush1.bf16.msra.mxu0 0
    %1004 = vmatprep.subr.bf16.mxu0 0
    %1005 = vmatpush1.bf16.msra.mxu0 0
    %1006 = vmatprep.subr.bf16.mxu0 0
    %1007 = vmatpush1.bf16.msra.mxu0 0
    %1008 = vmatprep.subr.bf16.mxu0 0
    %1009 = vmatpush1.bf16.msra.mxu0 0
    %1010 = vmatprep.subr.bf16.mxu0 0
    %1011 = vmatpush1.bf16.msra.mxu0 0
    %1012 = vmatprep.mubr.bf16.mxu0 0
    %1013 = vmatmul.mubr.bf16.gmra.mrb[0].mxu0 %v978
    %v1014 = vpop.f32.mrb[0].mxu0
    %v1015 = vadd.f32 0.0, %v1014
    %v1016 = vpop.f32.mrb[0].mxu0
    %v1017 = vpop.f32.mrb[0].mxu0
    %v1018 = vpop.f32.mrb[0].mxu0
    %1019 = vdwg.mxu0
    %v1020 = vld [vmem:[#allocation2 + $0x4] sm:$0x3]
    %v1021 = vadd.f32 %v1020, %v1015
    %v1022 = vtanh.pop %v1021
    %v1023 = vxor.u32 %v1021, 2147483648
    %v1024 = vmul.f32 %v1023, 1.442695
    %v1025 = vpow.pop %v1024
    %v1026 = vadd.f32 %v1025, 1.0
    %v1027 = vrcp.pop %v1026
    %v1028 = vmul.f32 1.0, %v1027
    %v1029 = vsel %vm123, %v1022, %v1028
    %v1030 = vmul.f32 %v1029, %v966
    %1032 = vrot.lane.b32.xlu0 %v1029, 64
    %v1033 = vpop.permute.xlu0 %1032
    %v1035 = vmul.f32 %v1029, %v1033
    %1037 = vrot.lane.b32.xlu0 %v1035, 32
    %v1038 = vpop.permute.xlu0 %1037
    %v1040 = vadd.f32 %v1030, %v1038
    %v1041 = vtanh.pop %v1040
    %1043 = vrot.lane.b32.xlu0 %v1041, 64
    %v1044 = vpop.permute.xlu0 %1043
    %v1046 = vmul.f32 %v1029, %v1044
    %v1047 = vpack.c.bf16 %v1046, %v1046
    %1049 = vrot.lane.b32.xlu0 %v1047, 32
    %v1050 = vpop.permute.xlu0 %1049
    %v1052 = vsel %vm149, %v1050, 0
    %1054 = vmatprep.subr.bf16.mxu0 0
    %1055 = vmatpush1.bf16.msra.mxu0 %v828
    %1056 = vmatprep.subr.bf16.mxu0 0
    %1057 = vmatpush1.bf16.msra.mxu0 %v829
    %1058 = vmatprep.subr.bf16.mxu0 0
    %1059 = vmatpush1.bf16.msra.mxu0 0
    %1060 = vmatprep.subr.bf16.mxu0 0
    %1061 = vmatpush1.bf16.msra.mxu0 0
    %1062 = vmatprep.subr.bf16.mxu0 0
    %1063 = vmatpush1.bf16.msra.mxu0 0
    %1064 = vmatprep.subr.bf16.mxu0 0
    %1065 = vmatpush1.bf16.msra.mxu0 0
    %1066 = vmatprep.subr.bf16.mxu0 0
    %1067 = vmatpush1.bf16.msra.mxu0 0
    %1068 = vmatprep.subr.bf16.mxu0 0
    %1069 = vmatpush1.bf16.msra.mxu0 0
    %1070 = vmatprep.subr.bf16.mxu0 0
    %1071 = vmatpush1.bf16.msra.mxu0 0
    %1072 = vmatprep.subr.bf16.mxu0 0
    %1073 = vmatpush1.bf16.msra.mxu0 0
    %1074 = vmatprep.subr.bf16.mxu0 0
    %1075 = vmatpush1.bf16.msra.mxu0 0
    %1076 = vmatprep.subr.bf16.mxu0 0
    %1077 = vmatpush1.bf16.msra.mxu0 0
    %1078 = vmatprep.subr.bf16.mxu0 0
    %1079 = vmatpush1.bf16.msra.mxu0 0
    %1080 = vmatprep.subr.bf16.mxu0 0
    %1081 = vmatpush1.bf16.msra.mxu0 0
    %1082 = vmatprep.subr.bf16.mxu0 0
    %1083 = vmatpush1.bf16.msra.mxu0 0
    %1084 = vmatprep.subr.bf16.mxu0 0
    %1085 = vmatpush1.bf16.msra.mxu0 0
    %1086 = vmatprep.mubr.bf16.mxu0 0
    %1087 = vmatmul.mubr.bf16.gmra.mrb[0].mxu0 %v1052
    %v1088 = vpop.f32.mrb[0].mxu0
    %v1089 = vadd.f32 0.0, %v1088
    %v1090 = vpop.f32.mrb[0].mxu0
    %v1091 = vpop.f32.mrb[0].mxu0
    %v1092 = vpop.f32.mrb[0].mxu0
    %1093 = vdwg.mxu0
    %v1094 = vld [vmem:[#allocation2 + $0x6] sm:$0x3]
    %v1095 = vadd.f32 %v1094, %v1089
    %v1096 = vtanh.pop %v1095
    %v1097 = vxor.u32 %v1095, 2147483648
    %v1098 = vmul.f32 %v1097, 1.442695
    %v1099 = vpow.pop %v1098
    %v1100 = vadd.f32 %v1099, 1.0
    %v1101 = vrcp.pop %v1100
    %v1102 = vmul.f32 1.0, %v1101
    %v1103 = vsel %vm123, %v1096, %v1102
    %v1104 = vmul.f32 %v1103, %v1040
    %1106 = vrot.lane.b32.xlu0 %v1103, 64
    %v1107 = vpop.permute.xlu0 %1106
    %v1109 = vmul.f32 %v1103, %v1107
    %1111 = vrot.lane.b32.xlu0 %v1109, 32
    %v1112 = vpop.permute.xlu0 %1111
    %v1114 = vadd.f32 %v1104, %v1112
    %v1115 = vtanh.pop %v1114
    %1117 = vrot.lane.b32.xlu0 %v1115, 64
    %v1118 = vpop.permute.xlu0 %1117
    %v1120 = vmul.f32 %v1103, %v1118
    %v1121 = vpack.c.bf16 %v1120, %v1120
    %1123 = vrot.lane.b32.xlu0 %v1121, 32
    %v1124 = vpop.permute.xlu0 %1123
    %v1126 = vsel %vm149, %v1124, 0
    %1128 = vmatprep.subr.bf16.mxu0 0
    %1129 = vmatpush1.bf16.msra.mxu0 %v828
    %1130 = vmatprep.subr.bf16.mxu0 0
    %1131 = vmatpush1.bf16.msra.mxu0 %v829
    %1132 = vmatprep.subr.bf16.mxu0 0
    %1133 = vmatpush1.bf16.msra.mxu0 0
    %1134 = vmatprep.subr.bf16.mxu0 0
    %1135 = vmatpush1.bf16.msra.mxu0 0
    %1136 = vmatprep.subr.bf16.mxu0 0
    %1137 = vmatpush1.bf16.msra.mxu0 0
    %1138 = vmatprep.subr.bf16.mxu0 0
    %1139 = vmatpush1.bf16.msra.mxu0 0
    %1140 = vmatprep.subr.bf16.mxu0 0
    %1141 = vmatpush1.bf16.msra.mxu0 0
    %1142 = vmatprep.subr.bf16.mxu0 0
    %1143 = vmatpush1.bf16.msra.mxu0 0
    %1144 = vmatprep.subr.bf16.mxu0 0
    %1145 = vmatpush1.bf16.msra.mxu0 0
    %1146 = vmatprep.subr.bf16.mxu0 0
    %1147 = vmatpush1.bf16.msra.mxu0 0
    %1148 = vmatprep.subr.bf16.mxu0 0
    %1149 = vmatpush1.bf16.msra.mxu0 0
    %1150 = vmatprep.subr.bf16.mxu0 0
    %1151 = vmatpush1.bf16.msra.mxu0 0
    %1152 = vmatprep.subr.bf16.mxu0 0
    %1153 = vmatpush1.bf16.msra.mxu0 0
    %1154 = vmatprep.subr.bf16.mxu0 0
    %1155 = vmatpush1.bf16.msra.mxu0 0
    %1156 = vmatprep.subr.bf16.mxu0 0
    %1157 = vmatpush1.bf16.msra.mxu0 0
    %1158 = vmatprep.subr.bf16.mxu0 0
    %1159 = vmatpush1.bf16.msra.mxu0 0
    %1160 = vmatprep.mubr.bf16.mxu0 0
    %1161 = vmatmul.mubr.bf16.gmra.mrb[0].mxu0 %v1126
    %v1162 = vpop.f32.mrb[0].mxu0
    %v1163 = vadd.f32 0.0, %v1162
    %v1164 = vpop.f32.mrb[0].mxu0
    %v1165 = vpop.f32.mrb[0].mxu0
    %v1166 = vpop.f32.mrb[0].mxu0
    %1167 = vdwg.mxu0
    %v1168 = vld [vmem:[#allocation2 + $0x8] sm:$0x3]
    %v1169 = vadd.f32 %v1168, %v1163
    %v1170 = vtanh.pop %v1169
    %v1171 = vxor.u32 %v1169, 2147483648
    %v1172 = vmul.f32 %v1171, 1.442695
    %v1173 = vpow.pop %v1172
    %v1174 = vadd.f32 %v1173, 1.0
    %v1175 = vrcp.pop %v1174
    %v1176 = vmul.f32 1.0, %v1175
    %v1177 = vsel %vm123, %v1170, %v1176
    %v1178 = vmul.f32 %v1177, %v1114
    %1180 = vrot.lane.b32.xlu0 %v1177, 64
    %v1181 = vpop.permute.xlu0 %1180
    %v1183 = vmul.f32 %v1177, %v1181
    %1185 = vrot.lane.b32.xlu0 %v1183, 32
    %v1186 = vpop.permute.xlu0 %1185
    %v1188 = vadd.f32 %v1178, %v1186
    %v1189 = vtanh.pop %v1188
    %1191 = vrot.lane.b32.xlu0 %v1189, 64
    %v1192 = vpop.permute.xlu0 %1191
    %v1194 = vmul.f32 %v1177, %v1192
    %v1195 = vpack.c.bf16 %v1194, %v1194
    %1197 = vrot.lane.b32.xlu0 %v1195, 32
    %v1198 = vpop.permute.xlu0 %1197
    %v1200 = vsel %vm149, %v1198, 0
    %1202 = vmatprep.subr.bf16.mxu0 0
    %1203 = vmatpush1.bf16.msra.mxu0 %v828
    %1204 = vmatprep.subr.bf16.mxu0 0
    %1205 = vmatpush1.bf16.msra.mxu0 %v829
    %1206 = vmatprep.subr.bf16.mxu0 0
    %1207 = vmatpush1.bf16.msra.mxu0 0
    %1208 = vmatprep.subr.bf16.mxu0 0
    %1209 = vmatpush1.bf16.msra.mxu0 0
    %1210 = vmatprep.subr.bf16.mxu0 0
    %1211 = vmatpush1.bf16.msra.mxu0 0
    %1212 = vmatprep.subr.bf16.mxu0 0
    %1213 = vmatpush1.bf16.msra.mxu0 0
    %1214 = vmatprep.subr.bf16.mxu0 0
    %1215 = vmatpush1.bf16.msra.mxu0 0
    %1216 = vmatprep.subr.bf16.mxu0 0
    %1217 = vmatpush1.bf16.msra.mxu0 0
    %1218 = vmatprep.subr.bf16.mxu0 0
    %1219 = vmatpush1.bf16.msra.mxu0 0
    %1220 = vmatprep.subr.bf16.mxu0 0
    %1221 = vmatpush1.bf16.msra.mxu0 0
    %1222 = vmatprep.subr.bf16.mxu0 0
    %1223 = vmatpush1.bf16.msra.mxu0 0
    %1224 = vmatprep.subr.bf16.mxu0 0
    %1225 = vmatpush1.bf16.msra.mxu0 0
    %1226 = vmatprep.subr.bf16.mxu0 0
    %1227 = vmatpush1.bf16.msra.mxu0 0
    %1228 = vmatprep.subr.bf16.mxu0 0
    %1229 = vmatpush1.bf16.msra.mxu0 0
    %1230 = vmatprep.subr.bf16.mxu0 0
    %1231 = vmatpush1.bf16.msra.mxu0 0
    %1232 = vmatprep.subr.bf16.mxu0 0
    %1233 = vmatpush1.bf16.msra.mxu0 0
    %1234 = vmatprep.mubr.bf16.mxu0 0
    %1235 = vmatmul.mubr.bf16.gmra.mrb[0].mxu0 %v1200
    %v1236 = vpop.f32.mrb[0].mxu0
    %v1237 = vadd.f32 0.0, %v1236
    %v1238 = vpop.f32.mrb[0].mxu0
    %v1239 = vpop.f32.mrb[0].mxu0
    %v1240 = vpop.f32.mrb[0].mxu0
    %1241 = vdwg.mxu0
    %v1242 = vld [vmem:[#allocation2 + $0xa] sm:$0x3]
    %v1243 = vadd.f32 %v1242, %v1237
    %v1244 = vtanh.pop %v1243
    %v1245 = vxor.u32 %v1243, 2147483648
    %v1246 = vmul.f32 %v1245, 1.442695
    %v1247 = vpow.pop %v1246
    %v1248 = vadd.f32 %v1247, 1.0
    %v1249 = vrcp.pop %v1248
    %v1250 = vmul.f32 1.0, %v1249
    %v1251 = vsel %vm123, %v1244, %v1250
    %v1252 = vmul.f32 %v1251, %v1188
    %1254 = vrot.lane.b32.xlu0 %v1251, 64
    %v1255 = vpop.permute.xlu0 %1254
    %v1257 = vmul.f32 %v1251, %v1255
    %1259 = vrot.lane.b32.xlu0 %v1257, 32
    %v1260 = vpop.permute.xlu0 %1259
    %v1262 = vadd.f32 %v1252, %v1260
    %v1263 = vtanh.pop %v1262
    %1265 = vrot.lane.b32.xlu0 %v1263, 64
    %v1266 = vpop.permute.xlu0 %1265
    %v1268 = vmul.f32 %v1251, %v1266
    %v1269 = vpack.c.bf16 %v1268, %v1268
    %1271 = vrot.lane.b32.xlu0 %v1269, 32
    %v1272 = vpop.permute.xlu0 %1271
    %v1274 = vsel %vm149, %v1272, 0
    %1276 = vmatprep.subr.bf16.mxu0 0
    %1277 = vmatpush1.bf16.msra.mxu0 %v828
    %1278 = vmatprep.subr.bf16.mxu0 0
    %1279 = vmatpush1.bf16.msra.mxu0 %v829
    %1280 = vmatprep.subr.bf16.mxu0 0
    %1281 = vmatpush1.bf16.msra.mxu0 0
    %1282 = vmatprep.subr.bf16.mxu0 0
    %1283 = vmatpush1.bf16.msra.mxu0 0
    %1284 = vmatprep.subr.bf16.mxu0 0
    %1285 = vmatpush1.bf16.msra.mxu0 0
    %1286 = vmatprep.subr.bf16.mxu0 0
    %1287 = vmatpush1.bf16.msra.mxu0 0
    %1288 = vmatprep.subr.bf16.mxu0 0
    %1289 = vmatpush1.bf16.msra.mxu0 0
    %1290 = vmatprep.subr.bf16.mxu0 0
    %1291 = vmatpush1.bf16.msra.mxu0 0
    %1292 = vmatprep.subr.bf16.mxu0 0
    %1293 = vmatpush1.bf16.msra.mxu0 0
    %1294 = vmatprep.subr.bf16.mxu0 0
    %1295 = vmatpush1.bf16.msra.mxu0 0
    %1296 = vmatprep.subr.bf16.mxu0 0
    %1297 = vmatpush1.bf16.msra.mxu0 0
    %1298 = vmatprep.subr.bf16.mxu0 0
    %1299 = vmatpush1.bf16.msra.mxu0 0
    %1300 = vmatprep.subr.bf16.mxu0 0
    %1301 = vmatpush1.bf16.msra.mxu0 0
    %1302 = vmatprep.subr.bf16.mxu0 0
    %1303 = vmatpush1.bf16.msra.mxu0 0
    %1304 = vmatprep.subr.bf16.mxu0 0
    %1305 = vmatpush1.bf16.msra.mxu0 0
    %1306 = vmatprep.subr.bf16.mxu0 0
    %1307 = vmatpush1.bf16.msra.mxu0 0
    %1308 = vmatprep.mubr.bf16.mxu0 0
    %1309 = vmatmul.mubr.bf16.gmra.mrb[0].mxu0 %v1274
    %v1310 = vpop.f32.mrb[0].mxu0
    %v1311 = vadd.f32 0.0, %v1310
    %v1312 = vpop.f32.mrb[0].mxu0
    %v1313 = vpop.f32.mrb[0].mxu0
    %v1314 = vpop.f32.mrb[0].mxu0
    %1315 = vdwg.mxu0
    %v1316 = vld [vmem:[#allocation2 + $0xc] sm:$0x3]
    %v1317 = vadd.f32 %v1316, %v1311
    %v1318 = vtanh.pop %v1317
    %v1319 = vxor.u32 %v1317, 2147483648
    %v1320 = vmul.f32 %v1319, 1.442695
    %v1321 = vpow.pop %v1320
    %v1322 = vadd.f32 %v1321, 1.0
    %v1323 = vrcp.pop %v1322
    %v1324 = vmul.f32 1.0, %v1323
    %v1325 = vsel %vm123, %v1318, %v1324
    %v1326 = vmul.f32 %v1325, %v1262
    %1328 = vrot.lane.b32.xlu0 %v1325, 64
    %v1329 = vpop.permute.xlu0 %1328
    %v1331 = vmul.f32 %v1325, %v1329
    %1333 = vrot.lane.b32.xlu0 %v1331, 32
    %v1334 = vpop.permute.xlu0 %1333
    %v1336 = vadd.f32 %v1326, %v1334
    %v1337 = vtanh.pop %v1336
    %1339 = vrot.lane.b32.xlu0 %v1337, 64
    %v1340 = vpop.permute.xlu0 %1339
    %v1342 = vmul.f32 %v1325, %v1340
    %v1343 = vpack.c.bf16 %v1342, %v1342
    %1345 = vrot.lane.b32.xlu0 %v1343, 32
    %v1346 = vpop.permute.xlu0 %1345
    %v1348 = vsel %vm149, %v1346, 0
    %1350 = vmatprep.subr.bf16.mxu0 0
    %1351 = vmatpush1.bf16.msra.mxu0 %v828
    %1352 = vmatprep.subr.bf16.mxu0 0
    %1353 = vmatpush1.bf16.msra.mxu0 %v829
    %1354 = vmatprep.subr.bf16.mxu0 0
    %1355 = vmatpush1.bf16.msra.mxu0 0
    %1356 = vmatprep.subr.bf16.mxu0 0
    %1357 = vmatpush1.bf16.msra.mxu0 0
    %1358 = vmatprep.subr.bf16.mxu0 0
    %1359 = vmatpush1.bf16.msra.mxu0 0
    %1360 = vmatprep.subr.bf16.mxu0 0
    %1361 = vmatpush1.bf16.msra.mxu0 0
    %1362 = vmatprep.subr.bf16.mxu0 0
    %1363 = vmatpush1.bf16.msra.mxu0 0
    %1364 = vmatprep.subr.bf16.mxu0 0
    %1365 = vmatpush1.bf16.msra.mxu0 0
    %1366 = vmatprep.subr.bf16.mxu0 0
    %1367 = vmatpush1.bf16.msra.mxu0 0
    %1368 = vmatprep.subr.bf16.mxu0 0
    %1369 = vmatpush1.bf16.msra.mxu0 0
    %1370 = vmatprep.subr.bf16.mxu0 0
    %1371 = vmatpush1.bf16.msra.mxu0 0
    %1372 = vmatprep.subr.bf16.mxu0 0
    %1373 = vmatpush1.bf16.msra.mxu0 0
    %1374 = vmatprep.subr.bf16.mxu0 0
    %1375 = vmatpush1.bf16.msra.mxu0 0
    %1376 = vmatprep.subr.bf16.mxu0 0
    %1377 = vmatpush1.bf16.msra.mxu0 0
    %1378 = vmatprep.subr.bf16.mxu0 0
    %1379 = vmatpush1.bf16.msra.mxu0 0
    %1380 = vmatprep.subr.bf16.mxu0 0
    %1381 = vmatpush1.bf16.msra.mxu0 0
    %1382 = vmatprep.mubr.bf16.mxu0 0
    %1383 = vmatmul.mubr.bf16.gmra.mrb[0].mxu0 %v1348
    %v1384 = vpop.f32.mrb[0].mxu0
    %v1385 = vadd.f32 0.0, %v1384
    %v1386 = vpop.f32.mrb[0].mxu0
    %v1387 = vpop.f32.mrb[0].mxu0
    %v1388 = vpop.f32.mrb[0].mxu0
    %1389 = vdwg.mxu0
    %v1390 = vld [vmem:[#allocation2 + $0xe] sm:$0x3]
    %v1391 = vadd.f32 %v1390, %v1385
    %v1392 = vtanh.pop %v1391
    %v1393 = vxor.u32 %v1391, 2147483648
    %v1394 = vmul.f32 %v1393, 1.442695
    %v1395 = vpow.pop %v1394
    %v1396 = vadd.f32 %v1395, 1.0
    %v1397 = vrcp.pop %v1396
    %v1398 = vmul.f32 1.0, %v1397
    %v1399 = vsel %vm123, %v1392, %v1398
    %v1400 = vmul.f32 %v1399, %v1336
    %1402 = vrot.lane.b32.xlu0 %v1399, 64
    %v1403 = vpop.permute.xlu0 %1402
    %v1405 = vmul.f32 %v1399, %v1403
    %1407 = vrot.lane.b32.xlu0 %v1405, 32
    %v1408 = vpop.permute.xlu0 %1407
    %v1410 = vadd.f32 %v1400, %v1408
    %v1411 = vtanh.pop %v1410
    %1413 = vrot.lane.b32.xlu0 %v1411, 64
    %v1414 = vpop.permute.xlu0 %1413
    %v1416 = vmul.f32 %v1399, %v1414
    %1418 = vrot.lane.b32.xlu0 %v1416, 32
    %v1419 = vpop.permute.xlu0 %1418
    %vm1421 = vcmask 254976
    %1422 = vst.msk [vmem:[#allocation3] sm:$0x3] %vm1421, %v1419
    // Predicated region
    $region26: #{encoder_forward.1} parent=1 // pred_check
      _
    $region27: #{encoder_forward.1} parent=1 // pred_check_branch
      %1424 = sbr.rel (0) target = $region29
    $region28: #{encoder_forward.1} parent=1 // pred_region
      %s1426 = ssub.s32 32, 32
      %1427 = vsyncadd [#allocation4], %s1426
      %s1429 = sshll.u32 [#allocation3], 4
      %s1430 = int_to_ptr.vmem [resolvable:$true] %s1429
      %1432 = dma.vmem_to_hbm [thread:$0]  %s1430, 32, %s6, [#allocation4]
    $region29: #{encoder_forward.1} parent=1 // pred_fallthru
      _
    // Predicated region
    $region30: #{encoder_forward.1} parent=1 // pred_check
      _
    $region31: #{encoder_forward.1} parent=1 // pred_check_branch
      %1434 = sbr.rel (0) target = $region33
    $region32: #{encoder_forward.1} parent=1 // pred_region
      %1435 = dma.done [#allocation4], 32
    $region33: #{encoder_forward.1} parent=1 // pred_fallthru
      _
    %1436 = vsyncpa [#allocation4], 1

</llo_original>
